<compile_context>
chip_gen: v5e
topology: v5e:2x2
jax: 0.10.0
libtpu: 0.0.40
codegen_flags: <defaults>
</compile_context>

<pallas_src>
import functools

import jax
import jax.numpy as jnp
from jax.experimental import pallas as pl
from jax.experimental.pallas import tpu as pltpu


def _pick_tile(n, preferred=256):
    """Full dim if it fits, otherwise the largest lane-aligned (x128) tile."""
    if n <= preferred:
        return n
    return max((preferred // 128) * 128, 128)


# -----------------------------------------------------------------------------
# Fused kernel: per (batch, row-tile of TM query points)
#   q_ref  : (1, C, TM)   query/centre points, channels-first (points on lanes)
#   pn_ref : (1, N, C)    all candidate points, channels-last (points on sublanes)
#   w*_ref : (out, in)    transposed 1x1-conv weights;  b*_ref : (out, 1)
#   out_ref: (1, M2, TM)  output block of [B, M2, N] (lane-dense stores)
# -----------------------------------------------------------------------------
def _sapp_knn_mlp_kernel(q_ref, pn_ref, w0_ref, b0_ref, w1_ref, b1_ref,
                         w2_ref, b2_ref, out_ref, *, feature_region):
    K = feature_region
    _, C, TM = q_ref.shape
    N = pn_ref.shape[1]

    q = q_ref[0]            # (C, TM)
    pn = pn_ref[0]          # (N, C)
    w0 = w0_ref[...]        # (M0, C)
    b0 = b0_ref[...]        # (M0, 1)
    w1 = w1_ref[...]        # (M1, M0)
    b1 = b1_ref[...]        # (M1, 1)
    w2 = w2_ref[...]        # (M2, M1)
    b2 = b2_ref[...]        # (M2, 1)

    # --- pairwise squared distances: candidates on sublanes, queries on lanes.
    # Direct per-channel (x - y)^2 (3 VPU FMAs): exact reference semantics,
    # no cancellation, no lane-sparse MXU push.
    d2 = jnp.zeros((N, TM), jnp.float32)
    for c in range(C):
        diff = pn[:, c:c + 1] - q[c:c + 1, :]                  # (N, TM)
        d2 = d2 + diff * diff

    # f32 row index (exact for any realistic N) -> guaranteed-lowering reduces.
    row_idx = jax.lax.broadcasted_iota(jnp.int32, (N, TM), 0).astype(jnp.float32)

    # --- running top-K selection fused with MLP layer 0 ----------------------
    h0_parts = []
    for _ in range(K):
        m = jnp.min(d2, axis=0, keepdims=True)                 # (1, TM)
        # argmin with lowest-index tie-break (matches top_k's stable pick)
        sel = jnp.min(jnp.where(d2 <= m, row_idx, float(N)),
                      axis=0, keepdims=True)                   # (1, TM)
        onehot = row_idx == sel                                # (N, TM)

        # Layer 0 (1x1 conv over C=3) as VPU FMAs on the selected neighbour's
        # relative coordinates; neighbour coords come from a one-hot masked sum
        # (this removes the take_along_axis gather entirely).
        h0_k = b0                                              # (M0, 1)
        for c in range(C):
            nbr_c = jnp.sum(jnp.where(onehot, pn[:, c:c + 1], 0.0),
                            axis=0, keepdims=True)             # (1, TM)
            rel_c = nbr_c - q[c:c + 1, :]                      # (1, TM)
            h0_k = h0_k + w0[:, c:c + 1] * rel_c               # (M0, TM)
        h0_parts.append(jnp.maximum(h0_k, 0.0))

        # mask the selected neighbour out for the next pass
        d2 = jnp.where(onehot, jnp.inf, d2)

    # --- fold K into the lane dimension: one MXU matmul per layer ------------
    h0 = jnp.concatenate(h0_parts, axis=1)                     # (M0, K*TM)
    h1 = jnp.maximum(
        jnp.dot(w1, h0, preferred_element_type=jnp.float32) + b1, 0.0)
    h2 = jnp.maximum(
        jnp.dot(w2, h1, preferred_element_type=jnp.float32) + b2, 0.0)

    # --- max over the K neighbours (static lane slices, lane-dense acc) ------
    acc = h2[:, 0:TM]
    for k in range(1, K):
        acc = jnp.maximum(acc, h2[:, k * TM:(k + 1) * TM])
    out_ref[0] = acc                                           # (M2, TM)


# -----------------------------------------------------------------------------
# SAPP forward: one pallas_call over grid (B, N / TM).
# -----------------------------------------------------------------------------
@functools.partial(jax.jit, static_argnames=("feature_region",))
def sapp_forward(xyz_bcn, params, feature_region):
    w0, b0, w1, b1, w2, b2 = params
    K = feature_region
    B, C, N = xyz_bcn.shape
    M0, M1, M2 = w0.shape[0], w1.shape[0], w2.shape[0]
    assert K <= N, "feature_region must not exceed the number of points"

    xyz = xyz_bcn.astype(jnp.float32)                          # (B, C, N)
    pts = jnp.transpose(xyz, (0, 2, 1))                        # (B, N, C) tiny

    TM = _pick_tile(N)
    grid = (B, pl.cdiv(N, TM))

    kernel = functools.partial(_sapp_knn_mlp_kernel, feature_region=K)
    return pl.pallas_call(
        kernel,
        out_shape=jax.ShapeDtypeStruct((B, M2, N), jnp.float32),
        grid=grid,
        in_specs=[
            pl.BlockSpec((1, C, TM), lambda b, i: (b, 0, i)),   # query tile
            pl.BlockSpec((1, N, C), lambda b, i: (b, 0, 0)),    # all candidates
            pl.BlockSpec((M0, C), lambda b, i: (0, 0)),
            pl.BlockSpec((M0, 1), lambda b, i: (0, 0)),
            pl.BlockSpec((M1, M0), lambda b, i: (0, 0)),
            pl.BlockSpec((M1, 1), lambda b, i: (0, 0)),
            pl.BlockSpec((M2, M1), lambda b, i: (0, 0)),
            pl.BlockSpec((M2, 1), lambda b, i: (0, 0)),
        ],
        out_specs=pl.BlockSpec((1, M2, TM), lambda b, i: (b, 0, i)),
        compiler_params=pltpu.CompilerParams(
            dimension_semantics=("parallel", "parallel"),
            vmem_limit_bytes=32 * 1024 * 1024),
    )(xyz, pts, w0, b0, w1, b1, w2, b2)


# -----------------------------------------------------------------------------
# Pure-JAX reference (mirrors the PyTorch forward) for verification.
# -----------------------------------------------------------------------------
def sapp_reference(xyz_bcn, params, feature_region):
    w0, b0, w1, b1, w2, b2 = params                            # (out,in), (out,1)
    K = feature_region
    pts = jnp.transpose(xyz_bcn, (0, 2, 1)).astype(jnp.float32)
    d2 = jnp.sum((pts[:, :, None, :] - pts[:, None, :, :]) ** 2, axis=-1)
    _, idx = jax.lax.top_k(-d2, K)                             # (B, N, K)
    grouped = jax.vmap(lambda p, i: p[i])(pts, idx)            # (B, N, K, C)
    rel = grouped - pts[:, :, None, :]
    hp = jax.lax.Precision.HIGHEST
    h = jax.nn.relu(jnp.einsum("bnkc,mc->bnkm", rel, w0, precision=hp) + b0[:, 0])
    h = jax.nn.relu(jnp.einsum("bnkc,mc->bnkm", h, w1, precision=hp) + b1[:, 0])
    h = jax.nn.relu(jnp.einsum("bnkc,mc->bnkm", h, w2, precision=hp) + b2[:, 0])
    out = jnp.max(h, axis=2)                                   # (B, N, M2)
    return jnp.transpose(out, (0, 2, 1))                       # (B, M2, N)


if __name__ == "__main__":
    # Module config: SAPP(feature_region=8, in_channel=3, mlp=[16, 32, 64])
    B, C, N = 2, 3, 16
    K = 8
    M0, M1, M2 = 16, 32, 64

    key = jax.random.PRNGKey(0)
    k_x, k_w0, k_b0, k_w1, k_b1, k_w2, k_b2 = jax.random.split(key, 7)

    # Conv2d(in, out, 1) weight [out, in, 1, 1] stored as W[out, in] so the
    # 1x1 conv is `W @ x + b` with points on the lane axis.
    w0 = 0.2 * jax.random.normal(k_w0, (M0, C), jnp.float32)
    b0 = 0.1 * jax.random.normal(k_b0, (M0, 1), jnp.float32)
    w1 = 0.2 * jax.random.normal(k_w1, (M1, M0), jnp.float32)
    b1 = 0.1 * jax.random.normal(k_b1, (M1, 1), jnp.float32)
    w2 = 0.2 * jax.random.normal(k_w2, (M2, M1), jnp.float32)
    b2 = 0.1 * jax.random.normal(k_b2, (M2, 1), jnp.float32)
    params = (w0, b0, w1, b1, w2, b2)

    xyz = jax.random.normal(k_x, (B, C, N), jnp.float32)       # [B, C, N]

    out = sapp_forward(xyz, params, K)
    out = jax.block_until_ready(out)
    assert out.shape == (B, M2, N), out.shape

    ref = sapp_reference(xyz, params, K)
    if not jnp.allclose(out, ref, rtol=2e-3, atol=2e-3):
        raise AssertionError(
            f"mismatch vs reference: max abs err {jnp.max(jnp.abs(out - ref))}")

    print("KERNEL_OK")
</pallas_src>

<mosaic_0001>
module attributes {stable_mosaic.version = 11 : i64} {
  func.func @_sapp_knn_mlp_kernel(%arg0: i32, %arg1: i32, %arg2: memref<1x3x16xf32, #tpu.memory_space<vmem>>, %arg3: memref<1x16x3xf32, #tpu.memory_space<vmem>>, %arg4: memref<16x3xf32, #tpu.memory_space<vmem>>, %arg5: memref<16x1xf32, #tpu.memory_space<vmem>>, %arg6: memref<32x16xf32, #tpu.memory_space<vmem>>, %arg7: memref<32x1xf32, #tpu.memory_space<vmem>>, %arg8: memref<64x32xf32, #tpu.memory_space<vmem>>, %arg9: memref<64x1xf32, #tpu.memory_space<vmem>>, %arg10: memref<1x64x16xf32, #tpu.memory_space<vmem>>) attributes {dimension_semantics = [#tpu.dimension_semantics<parallel>, #tpu.dimension_semantics<parallel>], iteration_bounds = array<i64: 2, 1>, scalar_prefetch = 0 : i64, scratch_operands = 0 : i64, tpu.core_type = #tpu.core_type<tc>, window_params = [{transform_indices = @transform_0, window_bounds = array<i64: 1, 3, 16>}, {transform_indices = @transform_1, window_bounds = array<i64: 1, 16, 3>}, {pipeline_mode = #tpu.pipeline_mode<synchronous>, transform_indices = @transform_2, window_bounds = array<i64: 16, 3>}, {pipeline_mode = #tpu.pipeline_mode<synchronous>, transform_indices = @transform_3, window_bounds = array<i64: 16, 1>}, {pipeline_mode = #tpu.pipeline_mode<synchronous>, transform_indices = @transform_4, window_bounds = array<i64: 32, 16>}, {pipeline_mode = #tpu.pipeline_mode<synchronous>, transform_indices = @transform_5, window_bounds = array<i64: 32, 1>}, {pipeline_mode = #tpu.pipeline_mode<synchronous>, transform_indices = @transform_6, window_bounds = array<i64: 64, 32>}, {pipeline_mode = #tpu.pipeline_mode<synchronous>, transform_indices = @transform_7, window_bounds = array<i64: 64, 1>}, {transform_indices = @transform_8, window_bounds = array<i64: 1, 64, 16>}]} {
    %c0 = arith.constant 0 : index
    %c0_0 = arith.constant 0 : index
    %c0_1 = arith.constant 0 : index
    %0 = vector.load %arg2[%c0, %c0_0, %c0_1] : memref<1x3x16xf32, #tpu.memory_space<vmem>>, vector<1x3x16xf32>
    %1 = vector.shape_cast %0 : vector<1x3x16xf32> to vector<3x16xf32>
    %c0_2 = arith.constant 0 : index
    %c0_3 = arith.constant 0 : index
    %c0_4 = arith.constant 0 : index
    %2 = vector.load %arg3[%c0_2, %c0_3, %c0_4] : memref<1x16x3xf32, #tpu.memory_space<vmem>>, vector<1x16x3xf32>
    %3 = vector.shape_cast %2 : vector<1x16x3xf32> to vector<16x3xf32>
    %c0_5 = arith.constant 0 : index
    %c0_6 = arith.constant 0 : index
    %4 = vector.load %arg4[%c0_5, %c0_6] : memref<16x3xf32, #tpu.memory_space<vmem>>, vector<16x3xf32>
    %c0_7 = arith.constant 0 : index
    %c0_8 = arith.constant 0 : index
    %5 = vector.load %arg5[%c0_7, %c0_8] : memref<16x1xf32, #tpu.memory_space<vmem>>, vector<16x1xf32>
    %c0_9 = arith.constant 0 : index
    %c0_10 = arith.constant 0 : index
    %6 = vector.load %arg6[%c0_9, %c0_10] : memref<32x16xf32, #tpu.memory_space<vmem>>, vector<32x16xf32>
    %c0_11 = arith.constant 0 : index
    %c0_12 = arith.constant 0 : index
    %7 = vector.load %arg7[%c0_11, %c0_12] : memref<32x1xf32, #tpu.memory_space<vmem>>, vector<32x1xf32>
    %c0_13 = arith.constant 0 : index
    %c0_14 = arith.constant 0 : index
    %8 = vector.load %arg8[%c0_13, %c0_14] : memref<64x32xf32, #tpu.memory_space<vmem>>, vector<64x32xf32>
    %c0_15 = arith.constant 0 : index
    %c0_16 = arith.constant 0 : index
    %9 = vector.load %arg9[%c0_15, %c0_16] : memref<64x1xf32, #tpu.memory_space<vmem>>, vector<64x1xf32>
    %cst = arith.constant 0.000000e+00 : f32
    %10 = vector.broadcast %cst : f32 to vector<16x16xf32>
    %11 = vector.extract_strided_slice %3 {offsets = [0, 0], sizes = [16, 1], strides = [1, 1]} : vector<16x3xf32> to vector<16x1xf32>
    %12 = vector.extract_strided_slice %1 {offsets = [0, 0], sizes = [1, 16], strides = [1, 1]} : vector<3x16xf32> to vector<1x16xf32>
    %13 = vector.broadcast %11 : vector<16x1xf32> to vector<16x16xf32>
    %14 = vector.broadcast %12 : vector<1x16xf32> to vector<16x16xf32>
    %15 = arith.subf %13, %14 : vector<16x16xf32>
    %16 = arith.mulf %15, %15 : vector<16x16xf32>
    %17 = arith.addf %10, %16 : vector<16x16xf32>
    %18 = vector.extract_strided_slice %3 {offsets = [0, 1], sizes = [16, 1], strides = [1, 1]} : vector<16x3xf32> to vector<16x1xf32>
    %19 = vector.extract_strided_slice %1 {offsets = [1, 0], sizes = [1, 16], strides = [1, 1]} : vector<3x16xf32> to vector<1x16xf32>
    %20 = vector.broadcast %18 : vector<16x1xf32> to vector<16x16xf32>
    %21 = vector.broadcast %19 : vector<1x16xf32> to vector<16x16xf32>
    %22 = arith.subf %20, %21 : vector<16x16xf32>
    %23 = arith.mulf %22, %22 : vector<16x16xf32>
    %24 = arith.addf %17, %23 : vector<16x16xf32>
    %25 = vector.extract_strided_slice %3 {offsets = [0, 2], sizes = [16, 1], strides = [1, 1]} : vector<16x3xf32> to vector<16x1xf32>
    %26 = vector.extract_strided_slice %1 {offsets = [2, 0], sizes = [1, 16], strides = [1, 1]} : vector<3x16xf32> to vector<1x16xf32>
    %27 = vector.broadcast %25 : vector<16x1xf32> to vector<16x16xf32>
    %28 = vector.broadcast %26 : vector<1x16xf32> to vector<16x16xf32>
    %29 = arith.subf %27, %28 : vector<16x16xf32>
    %30 = arith.mulf %29, %29 : vector<16x16xf32>
    %31 = arith.addf %24, %30 : vector<16x16xf32>
    %32 = tpu.iota {dimensions = array<i32: 0>} : vector<16x16xi32>
    %33 = arith.sitofp %32 : vector<16x16xi32> to vector<16x16xf32>
    %cst_17 = arith.constant dense<0x7F800000> : vector<16xf32>
    %34 = vector.multi_reduction <minimumf>, %31, %cst_17 [0] : vector<16x16xf32> to vector<16xf32>
    %35 = vector.shape_cast %34 : vector<16xf32> to vector<1x16xf32>
    %36 = vector.broadcast %35 : vector<1x16xf32> to vector<16x16xf32>
    %37 = arith.cmpf ole, %31, %36 : vector<16x16xf32>
    %cst_18 = arith.constant 1.600000e+01 : f32
    %38 = vector.broadcast %cst_18 : f32 to vector<16x16xf32>
    %39 = arith.select %37, %33, %38 : vector<16x16xi1>, vector<16x16xf32>
    %cst_19 = arith.constant dense<0x7F800000> : vector<16xf32>
    %40 = vector.multi_reduction <minimumf>, %39, %cst_19 [0] : vector<16x16xf32> to vector<16xf32>
    %41 = vector.shape_cast %40 : vector<16xf32> to vector<1x16xf32>
    %42 = vector.broadcast %41 : vector<1x16xf32> to vector<16x16xf32>
    %43 = arith.cmpf oeq, %33, %42 : vector<16x16xf32>
    %44 = vector.extract_strided_slice %3 {offsets = [0, 0], sizes = [16, 1], strides = [1, 1]} : vector<16x3xf32> to vector<16x1xf32>
    %cst_20 = arith.constant 0.000000e+00 : f32
    %45 = vector.shape_cast %44 : vector<16x1xf32> to vector<16x1xf32>
    %46 = vector.broadcast %45 : vector<16x1xf32> to vector<16x16xf32>
    %47 = vector.broadcast %cst_20 : f32 to vector<16x16xf32>
    %48 = arith.select %43, %46, %47 : vector<16x16xi1>, vector<16x16xf32>
    %cst_21 = arith.constant dense<0.000000e+00> : vector<16xf32>
    %49 = vector.multi_reduction <add>, %48, %cst_21 [0] : vector<16x16xf32> to vector<16xf32>
    %50 = vector.shape_cast %49 : vector<16xf32> to vector<1x16xf32>
    %51 = vector.extract_strided_slice %1 {offsets = [0, 0], sizes = [1, 16], strides = [1, 1]} : vector<3x16xf32> to vector<1x16xf32>
    %52 = arith.subf %50, %51 : vector<1x16xf32>
    %53 = vector.extract_strided_slice %4 {offsets = [0, 0], sizes = [16, 1], strides = [1, 1]} : vector<16x3xf32> to vector<16x1xf32>
    %54 = vector.broadcast %53 : vector<16x1xf32> to vector<16x16xf32>
    %55 = vector.broadcast %52 : vector<1x16xf32> to vector<16x16xf32>
    %56 = arith.mulf %54, %55 : vector<16x16xf32>
    %57 = vector.broadcast %5 : vector<16x1xf32> to vector<16x16xf32>
    %58 = arith.addf %57, %56 : vector<16x16xf32>
    %59 = vector.extract_strided_slice %3 {offsets = [0, 1], sizes = [16, 1], strides = [1, 1]} : vector<16x3xf32> to vector<16x1xf32>
    %cst_22 = arith.constant 0.000000e+00 : f32
    %60 = vector.shape_cast %59 : vector<16x1xf32> to vector<16x1xf32>
    %61 = vector.broadcast %60 : vector<16x1xf32> to vector<16x16xf32>
    %62 = vector.broadcast %cst_22 : f32 to vector<16x16xf32>
    %63 = arith.select %43, %61, %62 : vector<16x16xi1>, vector<16x16xf32>
    %cst_23 = arith.constant dense<0.000000e+00> : vector<16xf32>
    %64 = vector.multi_reduction <add>, %63, %cst_23 [0] : vector<16x16xf32> to vector<16xf32>
    %65 = vector.shape_cast %64 : vector<16xf32> to vector<1x16xf32>
    %66 = vector.extract_strided_slice %1 {offsets = [1, 0], sizes = [1, 16], strides = [1, 1]} : vector<3x16xf32> to vector<1x16xf32>
    %67 = arith.subf %65, %66 : vector<1x16xf32>
    %68 = vector.extract_strided_slice %4 {offsets = [0, 1], sizes = [16, 1], strides = [1, 1]} : vector<16x3xf32> to vector<16x1xf32>
    %69 = vector.broadcast %68 : vector<16x1xf32> to vector<16x16xf32>
    %70 = vector.broadcast %67 : vector<1x16xf32> to vector<16x16xf32>
    %71 = arith.mulf %69, %70 : vector<16x16xf32>
    %72 = arith.addf %58, %71 : vector<16x16xf32>
    %73 = vector.extract_strided_slice %3 {offsets = [0, 2], sizes = [16, 1], strides = [1, 1]} : vector<16x3xf32> to vector<16x1xf32>
    %cst_24 = arith.constant 0.000000e+00 : f32
    %74 = vector.shape_cast %73 : vector<16x1xf32> to vector<16x1xf32>
    %75 = vector.broadcast %74 : vector<16x1xf32> to vector<16x16xf32>
    %76 = vector.broadcast %cst_24 : f32 to vector<16x16xf32>
    %77 = arith.select %43, %75, %76 : vector<16x16xi1>, vector<16x16xf32>
    %cst_25 = arith.constant dense<0.000000e+00> : vector<16xf32>
    %78 = vector.multi_reduction <add>, %77, %cst_25 [0] : vector<16x16xf32> to vector<16xf32>
    %79 = vector.shape_cast %78 : vector<16xf32> to vector<1x16xf32>
    %80 = vector.extract_strided_slice %1 {offsets = [2, 0], sizes = [1, 16], strides = [1, 1]} : vector<3x16xf32> to vector<1x16xf32>
    %81 = arith.subf %79, %80 : vector<1x16xf32>
    %82 = vector.extract_strided_slice %4 {offsets = [0, 2], sizes = [16, 1], strides = [1, 1]} : vector<16x3xf32> to vector<16x1xf32>
    %83 = vector.broadcast %82 : vector<16x1xf32> to vector<16x16xf32>
    %84 = vector.broadcast %81 : vector<1x16xf32> to vector<16x16xf32>
    %85 = arith.mulf %83, %84 : vector<16x16xf32>
    %86 = arith.addf %72, %85 : vector<16x16xf32>
    %cst_26 = arith.constant 0.000000e+00 : f32
    %87 = vector.broadcast %cst_26 : f32 to vector<16x16xf32>
    %88 = arith.maximumf %86, %87 : vector<16x16xf32>
    %cst_27 = arith.constant 0x7F800000 : f32
    %89 = vector.broadcast %cst_27 : f32 to vector<16x16xf32>
    %90 = arith.select %43, %89, %31 : vector<16x16xi1>, vector<16x16xf32>
    %cst_28 = arith.constant dense<0x7F800000> : vector<16xf32>
    %91 = vector.multi_reduction <minimumf>, %90, %cst_28 [0] : vector<16x16xf32> to vector<16xf32>
    %92 = vector.shape_cast %91 : vector<16xf32> to vector<1x16xf32>
    %93 = vector.broadcast %92 : vector<1x16xf32> to vector<16x16xf32>
    %94 = arith.cmpf ole, %90, %93 : vector<16x16xf32>
    %cst_29 = arith.constant 1.600000e+01 : f32
    %95 = vector.broadcast %cst_29 : f32 to vector<16x16xf32>
    %96 = arith.select %94, %33, %95 : vector<16x16xi1>, vector<16x16xf32>
    %cst_30 = arith.constant dense<0x7F800000> : vector<16xf32>
    %97 = vector.multi_reduction <minimumf>, %96, %cst_30 [0] : vector<16x16xf32> to vector<16xf32>
    %98 = vector.shape_cast %97 : vector<16xf32> to vector<1x16xf32>
    %99 = vector.broadcast %98 : vector<1x16xf32> to vector<16x16xf32>
    %100 = arith.cmpf oeq, %33, %99 : vector<16x16xf32>
    %101 = vector.extract_strided_slice %3 {offsets = [0, 0], sizes = [16, 1], strides = [1, 1]} : vector<16x3xf32> to vector<16x1xf32>
    %cst_31 = arith.constant 0.000000e+00 : f32
    %102 = vector.shape_cast %101 : vector<16x1xf32> to vector<16x1xf32>
    %103 = vector.broadcast %102 : vector<16x1xf32> to vector<16x16xf32>
    %104 = vector.broadcast %cst_31 : f32 to vector<16x16xf32>
    %105 = arith.select %100, %103, %104 : vector<16x16xi1>, vector<16x16xf32>
    %cst_32 = arith.constant dense<0.000000e+00> : vector<16xf32>
    %106 = vector.multi_reduction <add>, %105, %cst_32 [0] : vector<16x16xf32> to vector<16xf32>
    %107 = vector.shape_cast %106 : vector<16xf32> to vector<1x16xf32>
    %108 = vector.extract_strided_slice %1 {offsets = [0, 0], sizes = [1, 16], strides = [1, 1]} : vector<3x16xf32> to vector<1x16xf32>
    %109 = arith.subf %107, %108 : vector<1x16xf32>
    %110 = vector.extract_strided_slice %4 {offsets = [0, 0], sizes = [16, 1], strides = [1, 1]} : vector<16x3xf32> to vector<16x1xf32>
    %111 = vector.broadcast %110 : vector<16x1xf32> to vector<16x16xf32>
    %112 = vector.broadcast %109 : vector<1x16xf32> to vector<16x16xf32>
    %113 = arith.mulf %111, %112 : vector<16x16xf32>
    %114 = vector.broadcast %5 : vector<16x1xf32> to vector<16x16xf32>
    %115 = arith.addf %114, %113 : vector<16x16xf32>
    %116 = vector.extract_strided_slice %3 {offsets = [0, 1], sizes = [16, 1], strides = [1, 1]} : vector<16x3xf32> to vector<16x1xf32>
    %cst_33 = arith.constant 0.000000e+00 : f32
    %117 = vector.shape_cast %116 : vector<16x1xf32> to vector<16x1xf32>
    %118 = vector.broadcast %117 : vector<16x1xf32> to vector<16x16xf32>
    %119 = vector.broadcast %cst_33 : f32 to vector<16x16xf32>
    %120 = arith.select %100, %118, %119 : vector<16x16xi1>, vector<16x16xf32>
    %cst_34 = arith.constant dense<0.000000e+00> : vector<16xf32>
    %121 = vector.multi_reduction <add>, %120, %cst_34 [0] : vector<16x16xf32> to vector<16xf32>
    %122 = vector.shape_cast %121 : vector<16xf32> to vector<1x16xf32>
    %123 = vector.extract_strided_slice %1 {offsets = [1, 0], sizes = [1, 16], strides = [1, 1]} : vector<3x16xf32> to vector<1x16xf32>
    %124 = arith.subf %122, %123 : vector<1x16xf32>
    %125 = vector.extract_strided_slice %4 {offsets = [0, 1], sizes = [16, 1], strides = [1, 1]} : vector<16x3xf32> to vector<16x1xf32>
    %126 = vector.broadcast %125 : vector<16x1xf32> to vector<16x16xf32>
    %127 = vector.broadcast %124 : vector<1x16xf32> to vector<16x16xf32>
    %128 = arith.mulf %126, %127 : vector<16x16xf32>
    %129 = arith.addf %115, %128 : vector<16x16xf32>
    %130 = vector.extract_strided_slice %3 {offsets = [0, 2], sizes = [16, 1], strides = [1, 1]} : vector<16x3xf32> to vector<16x1xf32>
    %cst_35 = arith.constant 0.000000e+00 : f32
    %131 = vector.shape_cast %130 : vector<16x1xf32> to vector<16x1xf32>
    %132 = vector.broadcast %131 : vector<16x1xf32> to vector<16x16xf32>
    %133 = vector.broadcast %cst_35 : f32 to vector<16x16xf32>
    %134 = arith.select %100, %132, %133 : vector<16x16xi1>, vector<16x16xf32>
    %cst_36 = arith.constant dense<0.000000e+00> : vector<16xf32>
    %135 = vector.multi_reduction <add>, %134, %cst_36 [0] : vector<16x16xf32> to vector<16xf32>
    %136 = vector.shape_cast %135 : vector<16xf32> to vector<1x16xf32>
    %137 = vector.extract_strided_slice %1 {offsets = [2, 0], sizes = [1, 16], strides = [1, 1]} : vector<3x16xf32> to vector<1x16xf32>
    %138 = arith.subf %136, %137 : vector<1x16xf32>
    %139 = vector.extract_strided_slice %4 {offsets = [0, 2], sizes = [16, 1], strides = [1, 1]} : vector<16x3xf32> to vector<16x1xf32>
    %140 = vector.broadcast %139 : vector<16x1xf32> to vector<16x16xf32>
    %141 = vector.broadcast %138 : vector<1x16xf32> to vector<16x16xf32>
    %142 = arith.mulf %140, %141 : vector<16x16xf32>
    %143 = arith.addf %129, %142 : vector<16x16xf32>
    %cst_37 = arith.constant 0.000000e+00 : f32
    %144 = vector.broadcast %cst_37 : f32 to vector<16x16xf32>
    %145 = arith.maximumf %143, %144 : vector<16x16xf32>
    %cst_38 = arith.constant 0x7F800000 : f32
    %146 = vector.broadcast %cst_38 : f32 to vector<16x16xf32>
    %147 = arith.select %100, %146, %90 : vector<16x16xi1>, vector<16x16xf32>
    %cst_39 = arith.constant dense<0x7F800000> : vector<16xf32>
    %148 = vector.multi_reduction <minimumf>, %147, %cst_39 [0] : vector<16x16xf32> to vector<16xf32>
    %149 = vector.shape_cast %148 : vector<16xf32> to vector<1x16xf32>
    %150 = vector.broadcast %149 : vector<1x16xf32> to vector<16x16xf32>
    %151 = arith.cmpf ole, %147, %150 : vector<16x16xf32>
    %cst_40 = arith.constant 1.600000e+01 : f32
    %152 = vector.broadcast %cst_40 : f32 to vector<16x16xf32>
    %153 = arith.select %151, %33, %152 : vector<16x16xi1>, vector<16x16xf32>
    %cst_41 = arith.constant dense<0x7F800000> : vector<16xf32>
    %154 = vector.multi_reduction <minimumf>, %153, %cst_41 [0] : vector<16x16xf32> to vector<16xf32>
    %155 = vector.shape_cast %154 : vector<16xf32> to vector<1x16xf32>
    %156 = vector.broadcast %155 : vector<1x16xf32> to vector<16x16xf32>
    %157 = arith.cmpf oeq, %33, %156 : vector<16x16xf32>
    %158 = vector.extract_strided_slice %3 {offsets = [0, 0], sizes = [16, 1], strides = [1, 1]} : vector<16x3xf32> to vector<16x1xf32>
    %cst_42 = arith.constant 0.000000e+00 : f32
    %159 = vector.shape_cast %158 : vector<16x1xf32> to vector<16x1xf32>
    %160 = vector.broadcast %159 : vector<16x1xf32> to vector<16x16xf32>
    %161 = vector.broadcast %cst_42 : f32 to vector<16x16xf32>
    %162 = arith.select %157, %160, %161 : vector<16x16xi1>, vector<16x16xf32>
    %cst_43 = arith.constant dense<0.000000e+00> : vector<16xf32>
    %163 = vector.multi_reduction <add>, %162, %cst_43 [0] : vector<16x16xf32> to vector<16xf32>
    %164 = vector.shape_cast %163 : vector<16xf32> to vector<1x16xf32>
    %165 = vector.extract_strided_slice %1 {offsets = [0, 0], sizes = [1, 16], strides = [1, 1]} : vector<3x16xf32> to vector<1x16xf32>
    %166 = arith.subf %164, %165 : vector<1x16xf32>
    %167 = vector.extract_strided_slice %4 {offsets = [0, 0], sizes = [16, 1], strides = [1, 1]} : vector<16x3xf32> to vector<16x1xf32>
    %168 = vector.broadcast %167 : vector<16x1xf32> to vector<16x16xf32>
    %169 = vector.broadcast %166 : vector<1x16xf32> to vector<16x16xf32>
    %170 = arith.mulf %168, %169 : vector<16x16xf32>
    %171 = vector.broadcast %5 : vector<16x1xf32> to vector<16x16xf32>
    %172 = arith.addf %171, %170 : vector<16x16xf32>
    %173 = vector.extract_strided_slice %3 {offsets = [0, 1], sizes = [16, 1], strides = [1, 1]} : vector<16x3xf32> to vector<16x1xf32>
    %cst_44 = arith.constant 0.000000e+00 : f32
    %174 = vector.shape_cast %173 : vector<16x1xf32> to vector<16x1xf32>
    %175 = vector.broadcast %174 : vector<16x1xf32> to vector<16x16xf32>
    %176 = vector.broadcast %cst_44 : f32 to vector<16x16xf32>
    %177 = arith.select %157, %175, %176 : vector<16x16xi1>, vector<16x16xf32>
    %cst_45 = arith.constant dense<0.000000e+00> : vector<16xf32>
    %178 = vector.multi_reduction <add>, %177, %cst_45 [0] : vector<16x16xf32> to vector<16xf32>
    %179 = vector.shape_cast %178 : vector<16xf32> to vector<1x16xf32>
    %180 = vector.extract_strided_slice %1 {offsets = [1, 0], sizes = [1, 16], strides = [1, 1]} : vector<3x16xf32> to vector<1x16xf32>
    %181 = arith.subf %179, %180 : vector<1x16xf32>
    %182 = vector.extract_strided_slice %4 {offsets = [0, 1], sizes = [16, 1], strides = [1, 1]} : vector<16x3xf32> to vector<16x1xf32>
    %183 = vector.broadcast %182 : vector<16x1xf32> to vector<16x16xf32>
    %184 = vector.broadcast %181 : vector<1x16xf32> to vector<16x16xf32>
    %185 = arith.mulf %183, %184 : vector<16x16xf32>
    %186 = arith.addf %172, %185 : vector<16x16xf32>
    %187 = vector.extract_strided_slice %3 {offsets = [0, 2], sizes = [16, 1], strides = [1, 1]} : vector<16x3xf32> to vector<16x1xf32>
    %cst_46 = arith.constant 0.000000e+00 : f32
    %188 = vector.shape_cast %187 : vector<16x1xf32> to vector<16x1xf32>
    %189 = vector.broadcast %188 : vector<16x1xf32> to vector<16x16xf32>
    %190 = vector.broadcast %cst_46 : f32 to vector<16x16xf32>
    %191 = arith.select %157, %189, %190 : vector<16x16xi1>, vector<16x16xf32>
    %cst_47 = arith.constant dense<0.000000e+00> : vector<16xf32>
    %192 = vector.multi_reduction <add>, %191, %cst_47 [0] : vector<16x16xf32> to vector<16xf32>
    %193 = vector.shape_cast %192 : vector<16xf32> to vector<1x16xf32>
    %194 = vector.extract_strided_slice %1 {offsets = [2, 0], sizes = [1, 16], strides = [1, 1]} : vector<3x16xf32> to vector<1x16xf32>
    %195 = arith.subf %193, %194 : vector<1x16xf32>
    %196 = vector.extract_strided_slice %4 {offsets = [0, 2], sizes = [16, 1], strides = [1, 1]} : vector<16x3xf32> to vector<16x1xf32>
    %197 = vector.broadcast %196 : vector<16x1xf32> to vector<16x16xf32>
    %198 = vector.broadcast %195 : vector<1x16xf32> to vector<16x16xf32>
    %199 = arith.mulf %197, %198 : vector<16x16xf32>
    %200 = arith.addf %186, %199 : vector<16x16xf32>
    %cst_48 = arith.constant 0.000000e+00 : f32
    %201 = vector.broadcast %cst_48 : f32 to vector<16x16xf32>
    %202 = arith.maximumf %200, %201 : vector<16x16xf32>
    %cst_49 = arith.constant 0x7F800000 : f32
    %203 = vector.broadcast %cst_49 : f32 to vector<16x16xf32>
    %204 = arith.select %157, %203, %147 : vector<16x16xi1>, vector<16x16xf32>
    %cst_50 = arith.constant dense<0x7F800000> : vector<16xf32>
    %205 = vector.multi_reduction <minimumf>, %204, %cst_50 [0] : vector<16x16xf32> to vector<16xf32>
    %206 = vector.shape_cast %205 : vector<16xf32> to vector<1x16xf32>
    %207 = vector.broadcast %206 : vector<1x16xf32> to vector<16x16xf32>
    %208 = arith.cmpf ole, %204, %207 : vector<16x16xf32>
    %cst_51 = arith.constant 1.600000e+01 : f32
    %209 = vector.broadcast %cst_51 : f32 to vector<16x16xf32>
    %210 = arith.select %208, %33, %209 : vector<16x16xi1>, vector<16x16xf32>
    %cst_52 = arith.constant dense<0x7F800000> : vector<16xf32>
    %211 = vector.multi_reduction <minimumf>, %210, %cst_52 [0] : vector<16x16xf32> to vector<16xf32>
    %212 = vector.shape_cast %211 : vector<16xf32> to vector<1x16xf32>
    %213 = vector.broadcast %212 : vector<1x16xf32> to vector<16x16xf32>
    %214 = arith.cmpf oeq, %33, %213 : vector<16x16xf32>
    %215 = vector.extract_strided_slice %3 {offsets = [0, 0], sizes = [16, 1], strides = [1, 1]} : vector<16x3xf32> to vector<16x1xf32>
    %cst_53 = arith.constant 0.000000e+00 : f32
    %216 = vector.shape_cast %215 : vector<16x1xf32> to vector<16x1xf32>
    %217 = vector.broadcast %216 : vector<16x1xf32> to vector<16x16xf32>
    %218 = vector.broadcast %cst_53 : f32 to vector<16x16xf32>
    %219 = arith.select %214, %217, %218 : vector<16x16xi1>, vector<16x16xf32>
    %cst_54 = arith.constant dense<0.000000e+00> : vector<16xf32>
    %220 = vector.multi_reduction <add>, %219, %cst_54 [0] : vector<16x16xf32> to vector<16xf32>
    %221 = vector.shape_cast %220 : vector<16xf32> to vector<1x16xf32>
    %222 = vector.extract_strided_slice %1 {offsets = [0, 0], sizes = [1, 16], strides = [1, 1]} : vector<3x16xf32> to vector<1x16xf32>
    %223 = arith.subf %221, %222 : vector<1x16xf32>
    %224 = vector.extract_strided_slice %4 {offsets = [0, 0], sizes = [16, 1], strides = [1, 1]} : vector<16x3xf32> to vector<16x1xf32>
    %225 = vector.broadcast %224 : vector<16x1xf32> to vector<16x16xf32>
    %226 = vector.broadcast %223 : vector<1x16xf32> to vector<16x16xf32>
    %227 = arith.mulf %225, %226 : vector<16x16xf32>
    %228 = vector.broadcast %5 : vector<16x1xf32> to vector<16x16xf32>
    %229 = arith.addf %228, %227 : vector<16x16xf32>
    %230 = vector.extract_strided_slice %3 {offsets = [0, 1], sizes = [16, 1], strides = [1, 1]} : vector<16x3xf32> to vector<16x1xf32>
    %cst_55 = arith.constant 0.000000e+00 : f32
    %231 = vector.shape_cast %230 : vector<16x1xf32> to vector<16x1xf32>
    %232 = vector.broadcast %231 : vector<16x1xf32> to vector<16x16xf32>
    %233 = vector.broadcast %cst_55 : f32 to vector<16x16xf32>
    %234 = arith.select %214, %232, %233 : vector<16x16xi1>, vector<16x16xf32>
    %cst_56 = arith.constant dense<0.000000e+00> : vector<16xf32>
    %235 = vector.multi_reduction <add>, %234, %cst_56 [0] : vector<16x16xf32> to vector<16xf32>
    %236 = vector.shape_cast %235 : vector<16xf32> to vector<1x16xf32>
    %237 = vector.extract_strided_slice %1 {offsets = [1, 0], sizes = [1, 16], strides = [1, 1]} : vector<3x16xf32> to vector<1x16xf32>
    %238 = arith.subf %236, %237 : vector<1x16xf32>
    %239 = vector.extract_strided_slice %4 {offsets = [0, 1], sizes = [16, 1], strides = [1, 1]} : vector<16x3xf32> to vector<16x1xf32>
    %240 = vector.broadcast %239 : vector<16x1xf32> to vector<16x16xf32>
    %241 = vector.broadcast %238 : vector<1x16xf32> to vector<16x16xf32>
    %242 = arith.mulf %240, %241 : vector<16x16xf32>
    %243 = arith.addf %229, %242 : vector<16x16xf32>
    %244 = vector.extract_strided_slice %3 {offsets = [0, 2], sizes = [16, 1], strides = [1, 1]} : vector<16x3xf32> to vector<16x1xf32>
    %cst_57 = arith.constant 0.000000e+00 : f32
    %245 = vector.shape_cast %244 : vector<16x1xf32> to vector<16x1xf32>
    %246 = vector.broadcast %245 : vector<16x1xf32> to vector<16x16xf32>
    %247 = vector.broadcast %cst_57 : f32 to vector<16x16xf32>
    %248 = arith.select %214, %246, %247 : vector<16x16xi1>, vector<16x16xf32>
    %cst_58 = arith.constant dense<0.000000e+00> : vector<16xf32>
    %249 = vector.multi_reduction <add>, %248, %cst_58 [0] : vector<16x16xf32> to vector<16xf32>
    %250 = vector.shape_cast %249 : vector<16xf32> to vector<1x16xf32>
    %251 = vector.extract_strided_slice %1 {offsets = [2, 0], sizes = [1, 16], strides = [1, 1]} : vector<3x16xf32> to vector<1x16xf32>
    %252 = arith.subf %250, %251 : vector<1x16xf32>
    %253 = vector.extract_strided_slice %4 {offsets = [0, 2], sizes = [16, 1], strides = [1, 1]} : vector<16x3xf32> to vector<16x1xf32>
    %254 = vector.broadcast %253 : vector<16x1xf32> to vector<16x16xf32>
    %255 = vector.broadcast %252 : vector<1x16xf32> to vector<16x16xf32>
    %256 = arith.mulf %254, %255 : vector<16x16xf32>
    %257 = arith.addf %243, %256 : vector<16x16xf32>
    %cst_59 = arith.constant 0.000000e+00 : f32
    %258 = vector.broadcast %cst_59 : f32 to vector<16x16xf32>
    %259 = arith.maximumf %257, %258 : vector<16x16xf32>
    %cst_60 = arith.constant 0x7F800000 : f32
    %260 = vector.broadcast %cst_60 : f32 to vector<16x16xf32>
    %261 = arith.select %214, %260, %204 : vector<16x16xi1>, vector<16x16xf32>
    %cst_61 = arith.constant dense<0x7F800000> : vector<16xf32>
    %262 = vector.multi_reduction <minimumf>, %261, %cst_61 [0] : vector<16x16xf32> to vector<16xf32>
    %263 = vector.shape_cast %262 : vector<16xf32> to vector<1x16xf32>
    %264 = vector.broadcast %263 : vector<1x16xf32> to vector<16x16xf32>
    %265 = arith.cmpf ole, %261, %264 : vector<16x16xf32>
    %cst_62 = arith.constant 1.600000e+01 : f32
    %266 = vector.broadcast %cst_62 : f32 to vector<16x16xf32>
    %267 = arith.select %265, %33, %266 : vector<16x16xi1>, vector<16x16xf32>
    %cst_63 = arith.constant dense<0x7F800000> : vector<16xf32>
    %268 = vector.multi_reduction <minimumf>, %267, %cst_63 [0] : vector<16x16xf32> to vector<16xf32>
    %269 = vector.shape_cast %268 : vector<16xf32> to vector<1x16xf32>
    %270 = vector.broadcast %269 : vector<1x16xf32> to vector<16x16xf32>
    %271 = arith.cmpf oeq, %33, %270 : vector<16x16xf32>
    %272 = vector.extract_strided_slice %3 {offsets = [0, 0], sizes = [16, 1], strides = [1, 1]} : vector<16x3xf32> to vector<16x1xf32>
    %cst_64 = arith.constant 0.000000e+00 : f32
    %273 = vector.shape_cast %272 : vector<16x1xf32> to vector<16x1xf32>
    %274 = vector.broadcast %273 : vector<16x1xf32> to vector<16x16xf32>
    %275 = vector.broadcast %cst_64 : f32 to vector<16x16xf32>
    %276 = arith.select %271, %274, %275 : vector<16x16xi1>, vector<16x16xf32>
    %cst_65 = arith.constant dense<0.000000e+00> : vector<16xf32>
    %277 = vector.multi_reduction <add>, %276, %cst_65 [0] : vector<16x16xf32> to vector<16xf32>
    %278 = vector.shape_cast %277 : vector<16xf32> to vector<1x16xf32>
    %279 = vector.extract_strided_slice %1 {offsets = [0, 0], sizes = [1, 16], strides = [1, 1]} : vector<3x16xf32> to vector<1x16xf32>
    %280 = arith.subf %278, %279 : vector<1x16xf32>
    %281 = vector.extract_strided_slice %4 {offsets = [0, 0], sizes = [16, 1], strides = [1, 1]} : vector<16x3xf32> to vector<16x1xf32>
    %282 = vector.broadcast %281 : vector<16x1xf32> to vector<16x16xf32>
    %283 = vector.broadcast %280 : vector<1x16xf32> to vector<16x16xf32>
    %284 = arith.mulf %282, %283 : vector<16x16xf32>
    %285 = vector.broadcast %5 : vector<16x1xf32> to vector<16x16xf32>
    %286 = arith.addf %285, %284 : vector<16x16xf32>
    %287 = vector.extract_strided_slice %3 {offsets = [0, 1], sizes = [16, 1], strides = [1, 1]} : vector<16x3xf32> to vector<16x1xf32>
    %cst_66 = arith.constant 0.000000e+00 : f32
    %288 = vector.shape_cast %287 : vector<16x1xf32> to vector<16x1xf32>
    %289 = vector.broadcast %288 : vector<16x1xf32> to vector<16x16xf32>
    %290 = vector.broadcast %cst_66 : f32 to vector<16x16xf32>
    %291 = arith.select %271, %289, %290 : vector<16x16xi1>, vector<16x16xf32>
    %cst_67 = arith.constant dense<0.000000e+00> : vector<16xf32>
    %292 = vector.multi_reduction <add>, %291, %cst_67 [0] : vector<16x16xf32> to vector<16xf32>
    %293 = vector.shape_cast %292 : vector<16xf32> to vector<1x16xf32>
    %294 = vector.extract_strided_slice %1 {offsets = [1, 0], sizes = [1, 16], strides = [1, 1]} : vector<3x16xf32> to vector<1x16xf32>
    %295 = arith.subf %293, %294 : vector<1x16xf32>
    %296 = vector.extract_strided_slice %4 {offsets = [0, 1], sizes = [16, 1], strides = [1, 1]} : vector<16x3xf32> to vector<16x1xf32>
    %297 = vector.broadcast %296 : vector<16x1xf32> to vector<16x16xf32>
    %298 = vector.broadcast %295 : vector<1x16xf32> to vector<16x16xf32>
    %299 = arith.mulf %297, %298 : vector<16x16xf32>
    %300 = arith.addf %286, %299 : vector<16x16xf32>
    %301 = vector.extract_strided_slice %3 {offsets = [0, 2], sizes = [16, 1], strides = [1, 1]} : vector<16x3xf32> to vector<16x1xf32>
    %cst_68 = arith.constant 0.000000e+00 : f32
    %302 = vector.shape_cast %301 : vector<16x1xf32> to vector<16x1xf32>
    %303 = vector.broadcast %302 : vector<16x1xf32> to vector<16x16xf32>
    %304 = vector.broadcast %cst_68 : f32 to vector<16x16xf32>
    %305 = arith.select %271, %303, %304 : vector<16x16xi1>, vector<16x16xf32>
    %cst_69 = arith.constant dense<0.000000e+00> : vector<16xf32>
    %306 = vector.multi_reduction <add>, %305, %cst_69 [0] : vector<16x16xf32> to vector<16xf32>
    %307 = vector.shape_cast %306 : vector<16xf32> to vector<1x16xf32>
    %308 = vector.extract_strided_slice %1 {offsets = [2, 0], sizes = [1, 16], strides = [1, 1]} : vector<3x16xf32> to vector<1x16xf32>
    %309 = arith.subf %307, %308 : vector<1x16xf32>
    %310 = vector.extract_strided_slice %4 {offsets = [0, 2], sizes = [16, 1], strides = [1, 1]} : vector<16x3xf32> to vector<16x1xf32>
    %311 = vector.broadcast %310 : vector<16x1xf32> to vector<16x16xf32>
    %312 = vector.broadcast %309 : vector<1x16xf32> to vector<16x16xf32>
    %313 = arith.mulf %311, %312 : vector<16x16xf32>
    %314 = arith.addf %300, %313 : vector<16x16xf32>
    %cst_70 = arith.constant 0.000000e+00 : f32
    %315 = vector.broadcast %cst_70 : f32 to vector<16x16xf32>
    %316 = arith.maximumf %314, %315 : vector<16x16xf32>
    %cst_71 = arith.constant 0x7F800000 : f32
    %317 = vector.broadcast %cst_71 : f32 to vector<16x16xf32>
    %318 = arith.select %271, %317, %261 : vector<16x16xi1>, vector<16x16xf32>
    %cst_72 = arith.constant dense<0x7F800000> : vector<16xf32>
    %319 = vector.multi_reduction <minimumf>, %318, %cst_72 [0] : vector<16x16xf32> to vector<16xf32>
    %320 = vector.shape_cast %319 : vector<16xf32> to vector<1x16xf32>
    %321 = vector.broadcast %320 : vector<1x16xf32> to vector<16x16xf32>
    %322 = arith.cmpf ole, %318, %321 : vector<16x16xf32>
    %cst_73 = arith.constant 1.600000e+01 : f32
    %323 = vector.broadcast %cst_73 : f32 to vector<16x16xf32>
    %324 = arith.select %322, %33, %323 : vector<16x16xi1>, vector<16x16xf32>
    %cst_74 = arith.constant dense<0x7F800000> : vector<16xf32>
    %325 = vector.multi_reduction <minimumf>, %324, %cst_74 [0] : vector<16x16xf32> to vector<16xf32>
    %326 = vector.shape_cast %325 : vector<16xf32> to vector<1x16xf32>
    %327 = vector.broadcast %326 : vector<1x16xf32> to vector<16x16xf32>
    %328 = arith.cmpf oeq, %33, %327 : vector<16x16xf32>
    %329 = vector.extract_strided_slice %3 {offsets = [0, 0], sizes = [16, 1], strides = [1, 1]} : vector<16x3xf32> to vector<16x1xf32>
    %cst_75 = arith.constant 0.000000e+00 : f32
    %330 = vector.shape_cast %329 : vector<16x1xf32> to vector<16x1xf32>
    %331 = vector.broadcast %330 : vector<16x1xf32> to vector<16x16xf32>
    %332 = vector.broadcast %cst_75 : f32 to vector<16x16xf32>
    %333 = arith.select %328, %331, %332 : vector<16x16xi1>, vector<16x16xf32>
    %cst_76 = arith.constant dense<0.000000e+00> : vector<16xf32>
    %334 = vector.multi_reduction <add>, %333, %cst_76 [0] : vector<16x16xf32> to vector<16xf32>
    %335 = vector.shape_cast %334 : vector<16xf32> to vector<1x16xf32>
    %336 = vector.extract_strided_slice %1 {offsets = [0, 0], sizes = [1, 16], strides = [1, 1]} : vector<3x16xf32> to vector<1x16xf32>
    %337 = arith.subf %335, %336 : vector<1x16xf32>
    %338 = vector.extract_strided_slice %4 {offsets = [0, 0], sizes = [16, 1], strides = [1, 1]} : vector<16x3xf32> to vector<16x1xf32>
    %339 = vector.broadcast %338 : vector<16x1xf32> to vector<16x16xf32>
    %340 = vector.broadcast %337 : vector<1x16xf32> to vector<16x16xf32>
    %341 = arith.mulf %339, %340 : vector<16x16xf32>
    %342 = vector.broadcast %5 : vector<16x1xf32> to vector<16x16xf32>
    %343 = arith.addf %342, %341 : vector<16x16xf32>
    %344 = vector.extract_strided_slice %3 {offsets = [0, 1], sizes = [16, 1], strides = [1, 1]} : vector<16x3xf32> to vector<16x1xf32>
    %cst_77 = arith.constant 0.000000e+00 : f32
    %345 = vector.shape_cast %344 : vector<16x1xf32> to vector<16x1xf32>
    %346 = vector.broadcast %345 : vector<16x1xf32> to vector<16x16xf32>
    %347 = vector.broadcast %cst_77 : f32 to vector<16x16xf32>
    %348 = arith.select %328, %346, %347 : vector<16x16xi1>, vector<16x16xf32>
    %cst_78 = arith.constant dense<0.000000e+00> : vector<16xf32>
    %349 = vector.multi_reduction <add>, %348, %cst_78 [0] : vector<16x16xf32> to vector<16xf32>
    %350 = vector.shape_cast %349 : vector<16xf32> to vector<1x16xf32>
    %351 = vector.extract_strided_slice %1 {offsets = [1, 0], sizes = [1, 16], strides = [1, 1]} : vector<3x16xf32> to vector<1x16xf32>
    %352 = arith.subf %350, %351 : vector<1x16xf32>
    %353 = vector.extract_strided_slice %4 {offsets = [0, 1], sizes = [16, 1], strides = [1, 1]} : vector<16x3xf32> to vector<16x1xf32>
    %354 = vector.broadcast %353 : vector<16x1xf32> to vector<16x16xf32>
    %355 = vector.broadcast %352 : vector<1x16xf32> to vector<16x16xf32>
    %356 = arith.mulf %354, %355 : vector<16x16xf32>
    %357 = arith.addf %343, %356 : vector<16x16xf32>
    %358 = vector.extract_strided_slice %3 {offsets = [0, 2], sizes = [16, 1], strides = [1, 1]} : vector<16x3xf32> to vector<16x1xf32>
    %cst_79 = arith.constant 0.000000e+00 : f32
    %359 = vector.shape_cast %358 : vector<16x1xf32> to vector<16x1xf32>
    %360 = vector.broadcast %359 : vector<16x1xf32> to vector<16x16xf32>
    %361 = vector.broadcast %cst_79 : f32 to vector<16x16xf32>
    %362 = arith.select %328, %360, %361 : vector<16x16xi1>, vector<16x16xf32>
    %cst_80 = arith.constant dense<0.000000e+00> : vector<16xf32>
    %363 = vector.multi_reduction <add>, %362, %cst_80 [0] : vector<16x16xf32> to vector<16xf32>
    %364 = vector.shape_cast %363 : vector<16xf32> to vector<1x16xf32>
    %365 = vector.extract_strided_slice %1 {offsets = [2, 0], sizes = [1, 16], strides = [1, 1]} : vector<3x16xf32> to vector<1x16xf32>
    %366 = arith.subf %364, %365 : vector<1x16xf32>
    %367 = vector.extract_strided_slice %4 {offsets = [0, 2], sizes = [16, 1], strides = [1, 1]} : vector<16x3xf32> to vector<16x1xf32>
    %368 = vector.broadcast %367 : vector<16x1xf32> to vector<16x16xf32>
    %369 = vector.broadcast %366 : vector<1x16xf32> to vector<16x16xf32>
    %370 = arith.mulf %368, %369 : vector<16x16xf32>
    %371 = arith.addf %357, %370 : vector<16x16xf32>
    %cst_81 = arith.constant 0.000000e+00 : f32
    %372 = vector.broadcast %cst_81 : f32 to vector<16x16xf32>
    %373 = arith.maximumf %371, %372 : vector<16x16xf32>
    %cst_82 = arith.constant 0x7F800000 : f32
    %374 = vector.broadcast %cst_82 : f32 to vector<16x16xf32>
    %375 = arith.select %328, %374, %318 : vector<16x16xi1>, vector<16x16xf32>
    %cst_83 = arith.constant dense<0x7F800000> : vector<16xf32>
    %376 = vector.multi_reduction <minimumf>, %375, %cst_83 [0] : vector<16x16xf32> to vector<16xf32>
    %377 = vector.shape_cast %376 : vector<16xf32> to vector<1x16xf32>
    %378 = vector.broadcast %377 : vector<1x16xf32> to vector<16x16xf32>
    %379 = arith.cmpf ole, %375, %378 : vector<16x16xf32>
    %cst_84 = arith.constant 1.600000e+01 : f32
    %380 = vector.broadcast %cst_84 : f32 to vector<16x16xf32>
    %381 = arith.select %379, %33, %380 : vector<16x16xi1>, vector<16x16xf32>
    %cst_85 = arith.constant dense<0x7F800000> : vector<16xf32>
    %382 = vector.multi_reduction <minimumf>, %381, %cst_85 [0] : vector<16x16xf32> to vector<16xf32>
    %383 = vector.shape_cast %382 : vector<16xf32> to vector<1x16xf32>
    %384 = vector.broadcast %383 : vector<1x16xf32> to vector<16x16xf32>
    %385 = arith.cmpf oeq, %33, %384 : vector<16x16xf32>
    %386 = vector.extract_strided_slice %3 {offsets = [0, 0], sizes = [16, 1], strides = [1, 1]} : vector<16x3xf32> to vector<16x1xf32>
    %cst_86 = arith.constant 0.000000e+00 : f32
    %387 = vector.shape_cast %386 : vector<16x1xf32> to vector<16x1xf32>
    %388 = vector.broadcast %387 : vector<16x1xf32> to vector<16x16xf32>
    %389 = vector.broadcast %cst_86 : f32 to vector<16x16xf32>
    %390 = arith.select %385, %388, %389 : vector<16x16xi1>, vector<16x16xf32>
    %cst_87 = arith.constant dense<0.000000e+00> : vector<16xf32>
    %391 = vector.multi_reduction <add>, %390, %cst_87 [0] : vector<16x16xf32> to vector<16xf32>
    %392 = vector.shape_cast %391 : vector<16xf32> to vector<1x16xf32>
    %393 = vector.extract_strided_slice %1 {offsets = [0, 0], sizes = [1, 16], strides = [1, 1]} : vector<3x16xf32> to vector<1x16xf32>
    %394 = arith.subf %392, %393 : vector<1x16xf32>
    %395 = vector.extract_strided_slice %4 {offsets = [0, 0], sizes = [16, 1], strides = [1, 1]} : vector<16x3xf32> to vector<16x1xf32>
    %396 = vector.broadcast %395 : vector<16x1xf32> to vector<16x16xf32>
    %397 = vector.broadcast %394 : vector<1x16xf32> to vector<16x16xf32>
    %398 = arith.mulf %396, %397 : vector<16x16xf32>
    %399 = vector.broadcast %5 : vector<16x1xf32> to vector<16x16xf32>
    %400 = arith.addf %399, %398 : vector<16x16xf32>
    %401 = vector.extract_strided_slice %3 {offsets = [0, 1], sizes = [16, 1], strides = [1, 1]} : vector<16x3xf32> to vector<16x1xf32>
    %cst_88 = arith.constant 0.000000e+00 : f32
    %402 = vector.shape_cast %401 : vector<16x1xf32> to vector<16x1xf32>
    %403 = vector.broadcast %402 : vector<16x1xf32> to vector<16x16xf32>
    %404 = vector.broadcast %cst_88 : f32 to vector<16x16xf32>
    %405 = arith.select %385, %403, %404 : vector<16x16xi1>, vector<16x16xf32>
    %cst_89 = arith.constant dense<0.000000e+00> : vector<16xf32>
    %406 = vector.multi_reduction <add>, %405, %cst_89 [0] : vector<16x16xf32> to vector<16xf32>
    %407 = vector.shape_cast %406 : vector<16xf32> to vector<1x16xf32>
    %408 = vector.extract_strided_slice %1 {offsets = [1, 0], sizes = [1, 16], strides = [1, 1]} : vector<3x16xf32> to vector<1x16xf32>
    %409 = arith.subf %407, %408 : vector<1x16xf32>
    %410 = vector.extract_strided_slice %4 {offsets = [0, 1], sizes = [16, 1], strides = [1, 1]} : vector<16x3xf32> to vector<16x1xf32>
    %411 = vector.broadcast %410 : vector<16x1xf32> to vector<16x16xf32>
    %412 = vector.broadcast %409 : vector<1x16xf32> to vector<16x16xf32>
    %413 = arith.mulf %411, %412 : vector<16x16xf32>
    %414 = arith.addf %400, %413 : vector<16x16xf32>
    %415 = vector.extract_strided_slice %3 {offsets = [0, 2], sizes = [16, 1], strides = [1, 1]} : vector<16x3xf32> to vector<16x1xf32>
    %cst_90 = arith.constant 0.000000e+00 : f32
    %416 = vector.shape_cast %415 : vector<16x1xf32> to vector<16x1xf32>
    %417 = vector.broadcast %416 : vector<16x1xf32> to vector<16x16xf32>
    %418 = vector.broadcast %cst_90 : f32 to vector<16x16xf32>
    %419 = arith.select %385, %417, %418 : vector<16x16xi1>, vector<16x16xf32>
    %cst_91 = arith.constant dense<0.000000e+00> : vector<16xf32>
    %420 = vector.multi_reduction <add>, %419, %cst_91 [0] : vector<16x16xf32> to vector<16xf32>
    %421 = vector.shape_cast %420 : vector<16xf32> to vector<1x16xf32>
    %422 = vector.extract_strided_slice %1 {offsets = [2, 0], sizes = [1, 16], strides = [1, 1]} : vector<3x16xf32> to vector<1x16xf32>
    %423 = arith.subf %421, %422 : vector<1x16xf32>
    %424 = vector.extract_strided_slice %4 {offsets = [0, 2], sizes = [16, 1], strides = [1, 1]} : vector<16x3xf32> to vector<16x1xf32>
    %425 = vector.broadcast %424 : vector<16x1xf32> to vector<16x16xf32>
    %426 = vector.broadcast %423 : vector<1x16xf32> to vector<16x16xf32>
    %427 = arith.mulf %425, %426 : vector<16x16xf32>
    %428 = arith.addf %414, %427 : vector<16x16xf32>
    %cst_92 = arith.constant 0.000000e+00 : f32
    %429 = vector.broadcast %cst_92 : f32 to vector<16x16xf32>
    %430 = arith.maximumf %428, %429 : vector<16x16xf32>
    %cst_93 = arith.constant 0x7F800000 : f32
    %431 = vector.broadcast %cst_93 : f32 to vector<16x16xf32>
    %432 = arith.select %385, %431, %375 : vector<16x16xi1>, vector<16x16xf32>
    %cst_94 = arith.constant dense<0x7F800000> : vector<16xf32>
    %433 = vector.multi_reduction <minimumf>, %432, %cst_94 [0] : vector<16x16xf32> to vector<16xf32>
    %434 = vector.shape_cast %433 : vector<16xf32> to vector<1x16xf32>
    %435 = vector.broadcast %434 : vector<1x16xf32> to vector<16x16xf32>
    %436 = arith.cmpf ole, %432, %435 : vector<16x16xf32>
    %cst_95 = arith.constant 1.600000e+01 : f32
    %437 = vector.broadcast %cst_95 : f32 to vector<16x16xf32>
    %438 = arith.select %436, %33, %437 : vector<16x16xi1>, vector<16x16xf32>
    %cst_96 = arith.constant dense<0x7F800000> : vector<16xf32>
    %439 = vector.multi_reduction <minimumf>, %438, %cst_96 [0] : vector<16x16xf32> to vector<16xf32>
    %440 = vector.shape_cast %439 : vector<16xf32> to vector<1x16xf32>
    %441 = vector.broadcast %440 : vector<1x16xf32> to vector<16x16xf32>
    %442 = arith.cmpf oeq, %33, %441 : vector<16x16xf32>
    %443 = vector.extract_strided_slice %3 {offsets = [0, 0], sizes = [16, 1], strides = [1, 1]} : vector<16x3xf32> to vector<16x1xf32>
    %cst_97 = arith.constant 0.000000e+00 : f32
    %444 = vector.shape_cast %443 : vector<16x1xf32> to vector<16x1xf32>
    %445 = vector.broadcast %444 : vector<16x1xf32> to vector<16x16xf32>
    %446 = vector.broadcast %cst_97 : f32 to vector<16x16xf32>
    %447 = arith.select %442, %445, %446 : vector<16x16xi1>, vector<16x16xf32>
    %cst_98 = arith.constant dense<0.000000e+00> : vector<16xf32>
    %448 = vector.multi_reduction <add>, %447, %cst_98 [0] : vector<16x16xf32> to vector<16xf32>
    %449 = vector.shape_cast %448 : vector<16xf32> to vector<1x16xf32>
    %450 = vector.extract_strided_slice %1 {offsets = [0, 0], sizes = [1, 16], strides = [1, 1]} : vector<3x16xf32> to vector<1x16xf32>
    %451 = arith.subf %449, %450 : vector<1x16xf32>
    %452 = vector.extract_strided_slice %4 {offsets = [0, 0], sizes = [16, 1], strides = [1, 1]} : vector<16x3xf32> to vector<16x1xf32>
    %453 = vector.broadcast %452 : vector<16x1xf32> to vector<16x16xf32>
    %454 = vector.broadcast %451 : vector<1x16xf32> to vector<16x16xf32>
    %455 = arith.mulf %453, %454 : vector<16x16xf32>
    %456 = vector.broadcast %5 : vector<16x1xf32> to vector<16x16xf32>
    %457 = arith.addf %456, %455 : vector<16x16xf32>
    %458 = vector.extract_strided_slice %3 {offsets = [0, 1], sizes = [16, 1], strides = [1, 1]} : vector<16x3xf32> to vector<16x1xf32>
    %cst_99 = arith.constant 0.000000e+00 : f32
    %459 = vector.shape_cast %458 : vector<16x1xf32> to vector<16x1xf32>
    %460 = vector.broadcast %459 : vector<16x1xf32> to vector<16x16xf32>
    %461 = vector.broadcast %cst_99 : f32 to vector<16x16xf32>
    %462 = arith.select %442, %460, %461 : vector<16x16xi1>, vector<16x16xf32>
    %cst_100 = arith.constant dense<0.000000e+00> : vector<16xf32>
    %463 = vector.multi_reduction <add>, %462, %cst_100 [0] : vector<16x16xf32> to vector<16xf32>
    %464 = vector.shape_cast %463 : vector<16xf32> to vector<1x16xf32>
    %465 = vector.extract_strided_slice %1 {offsets = [1, 0], sizes = [1, 16], strides = [1, 1]} : vector<3x16xf32> to vector<1x16xf32>
    %466 = arith.subf %464, %465 : vector<1x16xf32>
    %467 = vector.extract_strided_slice %4 {offsets = [0, 1], sizes = [16, 1], strides = [1, 1]} : vector<16x3xf32> to vector<16x1xf32>
    %468 = vector.broadcast %467 : vector<16x1xf32> to vector<16x16xf32>
    %469 = vector.broadcast %466 : vector<1x16xf32> to vector<16x16xf32>
    %470 = arith.mulf %468, %469 : vector<16x16xf32>
    %471 = arith.addf %457, %470 : vector<16x16xf32>
    %472 = vector.extract_strided_slice %3 {offsets = [0, 2], sizes = [16, 1], strides = [1, 1]} : vector<16x3xf32> to vector<16x1xf32>
    %cst_101 = arith.constant 0.000000e+00 : f32
    %473 = vector.shape_cast %472 : vector<16x1xf32> to vector<16x1xf32>
    %474 = vector.broadcast %473 : vector<16x1xf32> to vector<16x16xf32>
    %475 = vector.broadcast %cst_101 : f32 to vector<16x16xf32>
    %476 = arith.select %442, %474, %475 : vector<16x16xi1>, vector<16x16xf32>
    %cst_102 = arith.constant dense<0.000000e+00> : vector<16xf32>
    %477 = vector.multi_reduction <add>, %476, %cst_102 [0] : vector<16x16xf32> to vector<16xf32>
    %478 = vector.shape_cast %477 : vector<16xf32> to vector<1x16xf32>
    %479 = vector.extract_strided_slice %1 {offsets = [2, 0], sizes = [1, 16], strides = [1, 1]} : vector<3x16xf32> to vector<1x16xf32>
    %480 = arith.subf %478, %479 : vector<1x16xf32>
    %481 = vector.extract_strided_slice %4 {offsets = [0, 2], sizes = [16, 1], strides = [1, 1]} : vector<16x3xf32> to vector<16x1xf32>
    %482 = vector.broadcast %481 : vector<16x1xf32> to vector<16x16xf32>
    %483 = vector.broadcast %480 : vector<1x16xf32> to vector<16x16xf32>
    %484 = arith.mulf %482, %483 : vector<16x16xf32>
    %485 = arith.addf %471, %484 : vector<16x16xf32>
    %cst_103 = arith.constant 0.000000e+00 : f32
    %486 = vector.broadcast %cst_103 : f32 to vector<16x16xf32>
    %487 = arith.maximumf %485, %486 : vector<16x16xf32>
    %488 = tpu.concatenate %88, %145, %202, %259, %316, %373, %430, %487 in 1 : vector<16x16xf32>, vector<16x16xf32>, vector<16x16xf32>, vector<16x16xf32>, vector<16x16xf32>, vector<16x16xf32>, vector<16x16xf32>, vector<16x16xf32> -> vector<16x128xf32>
    %cst_104 = arith.constant dense<0.000000e+00> : vector<32x128xf32>
    %489 = tpu.matmul %6, %488, %cst_104 {dimension_numbers = #tpu.dot_dimension_numbers<[1], [0], [0], [1], [0, 0, 1, 1], [], []>} : vector<32x16xf32>, vector<16x128xf32>, vector<32x128xf32> -> vector<32x128xf32>
    %490 = vector.broadcast %7 : vector<32x1xf32> to vector<32x128xf32>
    %491 = arith.addf %489, %490 : vector<32x128xf32>
    %cst_105 = arith.constant 0.000000e+00 : f32
    %492 = vector.broadcast %cst_105 : f32 to vector<32x128xf32>
    %493 = arith.maximumf %491, %492 : vector<32x128xf32>
    %cst_106 = arith.constant dense<0.000000e+00> : vector<64x128xf32>
    %494 = tpu.matmul %8, %493, %cst_106 {dimension_numbers = #tpu.dot_dimension_numbers<[1], [0], [0], [1], [0, 0, 1, 1], [], []>} : vector<64x32xf32>, vector<32x128xf32>, vector<64x128xf32> -> vector<64x128xf32>
    %495 = vector.broadcast %9 : vector<64x1xf32> to vector<64x128xf32>
    %496 = arith.addf %494, %495 : vector<64x128xf32>
    %cst_107 = arith.constant 0.000000e+00 : f32
    %497 = vector.broadcast %cst_107 : f32 to vector<64x128xf32>
    %498 = arith.maximumf %496, %497 : vector<64x128xf32>
    %499 = vector.extract_strided_slice %498 {offsets = [0, 0], sizes = [64, 16], strides = [1, 1]} : vector<64x128xf32> to vector<64x16xf32>
    %500 = vector.extract_strided_slice %498 {offsets = [0, 16], sizes = [64, 16], strides = [1, 1]} : vector<64x128xf32> to vector<64x16xf32>
    %501 = arith.maximumf %499, %500 : vector<64x16xf32>
    %502 = vector.extract_strided_slice %498 {offsets = [0, 32], sizes = [64, 16], strides = [1, 1]} : vector<64x128xf32> to vector<64x16xf32>
    %503 = arith.maximumf %501, %502 : vector<64x16xf32>
    %504 = vector.extract_strided_slice %498 {offsets = [0, 48], sizes = [64, 16], strides = [1, 1]} : vector<64x128xf32> to vector<64x16xf32>
    %505 = arith.maximumf %503, %504 : vector<64x16xf32>
    %506 = vector.extract_strided_slice %498 {offsets = [0, 64], sizes = [64, 16], strides = [1, 1]} : vector<64x128xf32> to vector<64x16xf32>
    %507 = arith.maximumf %505, %506 : vector<64x16xf32>
    %508 = vector.extract_strided_slice %498 {offsets = [0, 80], sizes = [64, 16], strides = [1, 1]} : vector<64x128xf32> to vector<64x16xf32>
    %509 = arith.maximumf %507, %508 : vector<64x16xf32>
    %510 = vector.extract_strided_slice %498 {offsets = [0, 96], sizes = [64, 16], strides = [1, 1]} : vector<64x128xf32> to vector<64x16xf32>
    %511 = arith.maximumf %509, %510 : vector<64x16xf32>
    %512 = vector.extract_strided_slice %498 {offsets = [0, 112], sizes = [64, 16], strides = [1, 1]} : vector<64x128xf32> to vector<64x16xf32>
    %513 = arith.maximumf %511, %512 : vector<64x16xf32>
    %c0_108 = arith.constant 0 : index
    %c0_109 = arith.constant 0 : index
    %c0_110 = arith.constant 0 : index
    %514 = vector.load %arg10[%c0_108, %c0_109, %c0_110] : memref<1x64x16xf32, #tpu.memory_space<vmem>>, vector<1x64x16xf32>
    %515 = vector.shape_cast %514 : vector<1x64x16xf32> to vector<64x16xf32>
    %516 = vector.shape_cast %513 : vector<64x16xf32> to vector<1x64x16xf32>
    tpu.vector_store %arg10[%c0_108, %c0_109, %c0_110], %516 {strides = array<i32>} : memref<1x64x16xf32, #tpu.memory_space<vmem>>, vector<1x64x16xf32>,
    return
  }
  func.func @transform_0(%arg0: i32, %arg1: i32) -> (i32, i32, i32) {
    %c0_i32 = arith.constant 0 : i32
    %c0_i32_0 = arith.constant 0 : i32
    return %arg0, %c0_i32, %arg1 : i32, i32, i32
  }
  func.func @transform_1(%arg0: i32, %arg1: i32) -> (i32, i32, i32) {
    %c0_i32 = arith.constant 0 : i32
    %c0_i32_0 = arith.constant 0 : i32
    %c0_i32_1 = arith.constant 0 : i32
    return %arg0, %c0_i32, %c0_i32_0 : i32, i32, i32
  }
  func.func @transform_2(%arg0: i32, %arg1: i32) -> (i32, i32) {
    %c0_i32 = arith.constant 0 : i32
    %c0_i32_0 = arith.constant 0 : i32
    %c0_i32_1 = arith.constant 0 : i32
    return %c0_i32, %c0_i32_0 : i32, i32
  }
  func.func @transform_3(%arg0: i32, %arg1: i32) -> (i32, i32) {
    %c0_i32 = arith.constant 0 : i32
    %c0_i32_0 = arith.constant 0 : i32
    %c0_i32_1 = arith.constant 0 : i32
    return %c0_i32, %c0_i32_0 : i32, i32
  }
  func.func @transform_4(%arg0: i32, %arg1: i32) -> (i32, i32) {
    %c0_i32 = arith.constant 0 : i32
    %c0_i32_0 = arith.constant 0 : i32
    %c0_i32_1 = arith.constant 0 : i32
    return %c0_i32, %c0_i32_0 : i32, i32
  }
  func.func @transform_5(%arg0: i32, %arg1: i32) -> (i32, i32) {
    %c0_i32 = arith.constant 0 : i32
    %c0_i32_0 = arith.constant 0 : i32
    %c0_i32_1 = arith.constant 0 : i32
    return %c0_i32, %c0_i32_0 : i32, i32
  }
  func.func @transform_6(%arg0: i32, %arg1: i32) -> (i32, i32) {
    %c0_i32 = arith.constant 0 : i32
    %c0_i32_0 = arith.constant 0 : i32
    %c0_i32_1 = arith.constant 0 : i32
    return %c0_i32, %c0_i32_0 : i32, i32
  }
  func.func @transform_7(%arg0: i32, %arg1: i32) -> (i32, i32) {
    %c0_i32 = arith.constant 0 : i32
    %c0_i32_0 = arith.constant 0 : i32
    %c0_i32_1 = arith.constant 0 : i32
    return %c0_i32, %c0_i32_0 : i32, i32
  }
  func.func @transform_8(%arg0: i32, %arg1: i32) -> (i32, i32, i32) {
    %c0_i32 = arith.constant 0 : i32
    %c0_i32_0 = arith.constant 0 : i32
    return %arg0, %c0_i32, %arg1 : i32, i32, i32
  }
}

</mosaic_0001>

<llo_original>
// kernel: sapp_forward.1
$region0: #{sapp_forward.1}
  #allocation0 [shape = 'u32[]', space=smem, size = 0x4, offset = 0x4, fixed_abs, tag = 'smem constant byte address 0x4 - core index']
  #allocation1 [shape = 'u32[72,128]{1,0:T(1,128)}', space=vmem, size = 0x9000, scoped, tag = 'internal scratch']
  %s0 = inlined_call_operand.vmem [shape: f32[2,3,16], index: 0, kind: input, shape index: {}]
  %s1 = inlined_call_operand.vmem [shape: f32[2,16,3], index: 1, kind: input, shape index: {}]
  %s2 = inlined_call_operand.vmem [shape: f32[16,3], index: 2, kind: input, shape index: {}]
  %s3 = inlined_call_operand.vmem [shape: f32[16,1], index: 3, kind: input, shape index: {}]
  %s4 = inlined_call_operand.vmem [shape: f32[32,16], index: 4, kind: input, shape index: {}]
  %s5 = inlined_call_operand.vmem [shape: f32[32,1], index: 5, kind: input, shape index: {}]
  %s6 = inlined_call_operand.vmem [shape: f32[64,32], index: 6, kind: input, shape index: {}]
  %s7 = inlined_call_operand.vmem [shape: f32[64,1], index: 7, kind: input, shape index: {}]
  %s8 = inlined_call_operand.vmem [shape: f32[2,64,16], index: 8, kind: output, shape index: {}]
  %s9 = sld [smem:[#allocation0]]
  $region65: #{sapp_forward.1} parent=0
    _
  %s11 = ssub.s32 1, %s9
  %s12 = scalar_select 0, %s11, %s9
  loop: start=0, step=1, limit=4
  $region2: #{sapp_forward.1} parent=0 // loop_pre_header
    _
  $region3: #{sapp_forward.1} parent=0 // loop_header
    %s14 = sphi 0, %s18
    %p15 = scmp.ge.s32.totalorder %s14, 4
    %s21 = sphi 0, %s33
    %s22 = sphi 0, %s29
    %s23 = sphi 0, %s21
    %s24 = sphi 0, %s22
    %s25 = sphi 0, %s23
    %s26 = sphi 0, %s24
    %s38 = sphi 0, %s40
    %s41 = sphi 0, %s38
    %s42 = sphi 0, %s41
    %s58 = sphi 0, %s42
    %s64 = sphi 0, %s66
    %s67 = sphi 0, %s64
    %s68 = sphi 0, %s67
    %s84 = sphi 0, %s68
    %s88 = sphi 0, %s88
    %s90 = sphi 0, %s88
    %s91 = sphi 0, %s90
    %s105 = sphi 0, %s91
    %s109 = sphi 0, %s109
    %s111 = sphi 0, %s109
    %s112 = sphi 0, %s111
    %s126 = sphi 0, %s112
    %s130 = sphi 0, %s130
    %s132 = sphi 0, %s130
    %s133 = sphi 0, %s132
    %s147 = sphi 0, %s133
    %s151 = sphi 0, %s151
    %s153 = sphi 0, %s151
    %s154 = sphi 0, %s153
    %s168 = sphi 0, %s154
    %s172 = sphi 0, %s172
    %s174 = sphi 0, %s172
    %s175 = sphi 0, %s174
    %s189 = sphi 0, %s175
    %s193 = sphi 0, %s193
    %s195 = sphi 0, %s193
    %s196 = sphi 0, %s195
    %s210 = sphi 0, %s196
    %s218 = sphi 0, %s220
    %s221 = sphi 0, %s218
    %s222 = sphi 0, %s221
    %s238 = sphi 0, %s222
  $region4: #{sapp_forward.1} parent=0 // loop_header_branch
    %17 = sbr.rel (%p15) target = $region8
  $region5: #{sapp_forward.1} parent=0 // loop_body
    %s19 = ssub.s32 %s14, 1
    %s20 = ssub.s32 %s14, 2
    %s27 = sadd.s32 1, %s22
    %p28 = scmp.ge.s32.totalorder %s27, 1
    %s29 = scalar_select %p28, 0, %s27
    %s30 = sadd.s32 1, %s21
    %s31 = scalar_select %p28, %s30, %s21
    %p32 = scmp.ge.s32.totalorder %s31, 2
    %s33 = scalar_select %p32, 0, %s31
    %s34 = ssub.s32 %s21, %s33
    %s35 = ssub.s32 %s22, %s29
    %s36 = sor.u32 %s34, %s35
    %p37 = scmp.eq.s32.totalorder %s36, 0
    %s39 = sadd.s32 %s38, 1
    %s40 = scalar_select %p37, %s38, %s39
    %p43 = pneg %p37
    %p44 = scmp.eq.s32.totalorder %s14, 1
    %p45 = por %p43, %p44
    %p46 = scmp.ne.s32.totalorder %s38, %s41
    %p47 = scmp.eq.s32.totalorder %s14, 0
    %p48 = por %p46, %p47
    %p49 = scmp.ne.s32.totalorder %s38, %s41
    %p50 = scmp.eq.s32.totalorder %s19, 1
    %p51 = por %p49, %p50
    %p52 = scmp.ne.s32.totalorder %s41, %s42
    %p53 = scmp.eq.s32.totalorder %s19, 0
    %p54 = por %p52, %p53
    %p55 = scmp.ne.s32.totalorder %s41, %s42
    %p56 = scmp.eq.s32.totalorder %s20, 1
    %p57 = por %p55, %p56
    %p59 = scmp.ne.s32.totalorder %s42, %s58
    %p60 = scmp.eq.s32.totalorder %s20, 0
    %p61 = por %p59, %p60
    %s62 = ssub.s32 %s21, %s33
    %p63 = scmp.eq.s32.totalorder %s62, 0
    %s65 = sadd.s32 %s64, 1
    %s66 = scalar_select %p63, %s64, %s65
    %p69 = pneg %p63
    %p70 = scmp.eq.s32.totalorder %s14, 1
    %p71 = por %p69, %p70
    %p72 = scmp.ne.s32.totalorder %s64, %s67
    %p73 = scmp.eq.s32.totalorder %s14, 0
    %p74 = por %p72, %p73
    %p75 = scmp.ne.s32.totalorder %s64, %s67
    %p76 = scmp.eq.s32.totalorder %s19, 1
    %p77 = por %p75, %p76
    %p78 = scmp.ne.s32.totalorder %s67, %s68
    %p79 = scmp.eq.s32.totalorder %s19, 0
    %p80 = por %p78, %p79
    %p81 = scmp.ne.s32.totalorder %s67, %s68
    %p82 = scmp.eq.s32.totalorder %s20, 1
    %p83 = por %p81, %p82
    %p85 = scmp.ne.s32.totalorder %s68, %s84
    %p86 = scmp.eq.s32.totalorder %s20, 0
    %p87 = por %p85, %p86
    %s89 = sadd.s32 %s88, 1
    %p92 = scmp.eq.s32.totalorder %s14, 1
    %p93 = scmp.ne.s32.totalorder %s88, %s90
    %p94 = scmp.eq.s32.totalorder %s14, 0
    %p95 = por %p93, %p94
    %p96 = scmp.ne.s32.totalorder %s88, %s90
    %p97 = scmp.eq.s32.totalorder %s19, 1
    %p98 = por %p96, %p97
    %p99 = scmp.ne.s32.totalorder %s90, %s91
    %p100 = scmp.eq.s32.totalorder %s19, 0
    %p101 = por %p99, %p100
    %p102 = scmp.ne.s32.totalorder %s90, %s91
    %p103 = scmp.eq.s32.totalorder %s20, 1
    %p104 = por %p102, %p103
    %p106 = scmp.ne.s32.totalorder %s91, %s105
    %p107 = scmp.eq.s32.totalorder %s20, 0
    %p108 = por %p106, %p107
    %s110 = sadd.s32 %s109, 1
    %p113 = scmp.eq.s32.totalorder %s14, 1
    %p114 = scmp.ne.s32.totalorder %s109, %s111
    %p115 = scmp.eq.s32.totalorder %s14, 0
    %p116 = por %p114, %p115
    %p117 = scmp.ne.s32.totalorder %s109, %s111
    %p118 = scmp.eq.s32.totalorder %s19, 1
    %p119 = por %p117, %p118
    %p120 = scmp.ne.s32.totalorder %s111, %s112
    %p121 = scmp.eq.s32.totalorder %s19, 0
    %p122 = por %p120, %p121
    %p123 = scmp.ne.s32.totalorder %s111, %s112
    %p124 = scmp.eq.s32.totalorder %s20, 1
    %p125 = por %p123, %p124
    %p127 = scmp.ne.s32.totalorder %s112, %s126
    %p128 = scmp.eq.s32.totalorder %s20, 0
    %p129 = por %p127, %p128
    %s131 = sadd.s32 %s130, 1
    %p134 = scmp.eq.s32.totalorder %s14, 1
    %p135 = scmp.ne.s32.totalorder %s130, %s132
    %p136 = scmp.eq.s32.totalorder %s14, 0
    %p137 = por %p135, %p136
    %p138 = scmp.ne.s32.totalorder %s130, %s132
    %p139 = scmp.eq.s32.totalorder %s19, 1
    %p140 = por %p138, %p139
    %p141 = scmp.ne.s32.totalorder %s132, %s133
    %p142 = scmp.eq.s32.totalorder %s19, 0
    %p143 = por %p141, %p142
    %p144 = scmp.ne.s32.totalorder %s132, %s133
    %p145 = scmp.eq.s32.totalorder %s20, 1
    %p146 = por %p144, %p145
    %p148 = scmp.ne.s32.totalorder %s133, %s147
    %p149 = scmp.eq.s32.totalorder %s20, 0
    %p150 = por %p148, %p149
    %s152 = sadd.s32 %s151, 1
    %p155 = scmp.eq.s32.totalorder %s14, 1
    %p156 = scmp.ne.s32.totalorder %s151, %s153
    %p157 = scmp.eq.s32.totalorder %s14, 0
    %p158 = por %p156, %p157
    %p159 = scmp.ne.s32.totalorder %s151, %s153
    %p160 = scmp.eq.s32.totalorder %s19, 1
    %p161 = por %p159, %p160
    %p162 = scmp.ne.s32.totalorder %s153, %s154
    %p163 = scmp.eq.s32.totalorder %s19, 0
    %p164 = por %p162, %p163
    %p165 = scmp.ne.s32.totalorder %s153, %s154
    %p166 = scmp.eq.s32.totalorder %s20, 1
    %p167 = por %p165, %p166
    %p169 = scmp.ne.s32.totalorder %s154, %s168
    %p170 = scmp.eq.s32.totalorder %s20, 0
    %p171 = por %p169, %p170
    %s173 = sadd.s32 %s172, 1
    %p176 = scmp.eq.s32.totalorder %s14, 1
    %p177 = scmp.ne.s32.totalorder %s172, %s174
    %p178 = scmp.eq.s32.totalorder %s14, 0
    %p179 = por %p177, %p178
    %p180 = scmp.ne.s32.totalorder %s172, %s174
    %p181 = scmp.eq.s32.totalorder %s19, 1
    %p182 = por %p180, %p181
    %p183 = scmp.ne.s32.totalorder %s174, %s175
    %p184 = scmp.eq.s32.totalorder %s19, 0
    %p185 = por %p183, %p184
    %p186 = scmp.ne.s32.totalorder %s174, %s175
    %p187 = scmp.eq.s32.totalorder %s20, 1
    %p188 = por %p186, %p187
    %p190 = scmp.ne.s32.totalorder %s175, %s189
    %p191 = scmp.eq.s32.totalorder %s20, 0
    %p192 = por %p190, %p191
    %s194 = sadd.s32 %s193, 1
    %p197 = scmp.eq.s32.totalorder %s14, 1
    %p198 = scmp.ne.s32.totalorder %s193, %s195
    %p199 = scmp.eq.s32.totalorder %s14, 0
    %p200 = por %p198, %p199
    %p201 = scmp.ne.s32.totalorder %s193, %s195
    %p202 = scmp.eq.s32.totalorder %s19, 1
    %p203 = por %p201, %p202
    %p204 = scmp.ne.s32.totalorder %s195, %s196
    %p205 = scmp.eq.s32.totalorder %s19, 0
    %p206 = por %p204, %p205
    %p207 = scmp.ne.s32.totalorder %s195, %s196
    %p208 = scmp.eq.s32.totalorder %s20, 1
    %p209 = por %p207, %p208
    %p211 = scmp.ne.s32.totalorder %s196, %s210
    %p212 = scmp.eq.s32.totalorder %s20, 0
    %p213 = por %p211, %p212
    %s214 = ssub.s32 %s21, %s33
    %s215 = ssub.s32 %s22, %s29
    %s216 = sor.u32 %s214, %s215
    %p217 = scmp.eq.s32.totalorder %s216, 0
    %s219 = sadd.s32 %s218, 1
    %s220 = scalar_select %p217, %s218, %s219
    %p223 = pneg %p217
    %p224 = scmp.eq.s32.totalorder %s14, 1
    %p225 = por %p223, %p224
    %p226 = scmp.ne.s32.totalorder %s218, %s221
    %p227 = scmp.eq.s32.totalorder %s14, 0
    %p228 = por %p226, %p227
    %p229 = scmp.ne.s32.totalorder %s218, %s221
    %p230 = scmp.eq.s32.totalorder %s19, 1
    %p231 = por %p229, %p230
    %p232 = scmp.ne.s32.totalorder %s221, %s222
    %p233 = scmp.eq.s32.totalorder %s19, 0
    %p234 = por %p232, %p233
    %p235 = scmp.ne.s32.totalorder %s221, %s222
    %p236 = scmp.eq.s32.totalorder %s20, 1
    %p237 = por %p235, %p236
    %p239 = scmp.ne.s32.totalorder %s222, %s238
    %p240 = scmp.eq.s32.totalorder %s20, 0
    %p241 = por %p239, %p240
    %p242 = scmp.le.s32.totalorder 1, %s14
    %p243 = scmp.lt.s32.totalorder %s14, 3
    %p244 = pnand %p242, %p243
    %p245 = pneg %p244
    // Predicated region
    $region9: #{sapp_forward.1} parent=5 // pred_check
      _
    $region10: #{sapp_forward.1} parent=5 // pred_check_branch
      %247 = sbr.rel (%p244) target = $region12
    $region11: #{sapp_forward.1} parent=5 // pred_region
      %s248 = ssub.s32 %s14, 1
      // Predicated region
      $region13: #{sapp_forward.1} parent=11 // pred_check
        %p249 = pneg %p101
      $region14: #{sapp_forward.1} parent=11 // pred_check_branch
        %251 = sbr.rel (%p249) target = $region16
      $region15: #{sapp_forward.1} parent=11 // pred_region
        _
      $region16: #{sapp_forward.1} parent=11 // pred_fallthru
        _
      // Predicated region
      $region17: #{sapp_forward.1} parent=11 // pred_check
        %p252 = pneg %p122
      $region18: #{sapp_forward.1} parent=11 // pred_check_branch
        %254 = sbr.rel (%p252) target = $region20
      $region19: #{sapp_forward.1} parent=11 // pred_region
        _
      $region20: #{sapp_forward.1} parent=11 // pred_fallthru
        _
      // Predicated region
      $region21: #{sapp_forward.1} parent=11 // pred_check
        %p255 = pneg %p143
      $region22: #{sapp_forward.1} parent=11 // pred_check_branch
        %257 = sbr.rel (%p255) target = $region24
      $region23: #{sapp_forward.1} parent=11 // pred_region
        _
      $region24: #{sapp_forward.1} parent=11 // pred_fallthru
        _
      // Predicated region
      $region25: #{sapp_forward.1} parent=11 // pred_check
        %p258 = pneg %p164
      $region26: #{sapp_forward.1} parent=11 // pred_check_branch
        %260 = sbr.rel (%p258) target = $region28
      $region27: #{sapp_forward.1} parent=11 // pred_region
        _
      $region28: #{sapp_forward.1} parent=11 // pred_fallthru
        _
      // Predicated region
      $region29: #{sapp_forward.1} parent=11 // pred_check
        %p261 = pneg %p185
      $region30: #{sapp_forward.1} parent=11 // pred_check_branch
        %263 = sbr.rel (%p261) target = $region32
      $region31: #{sapp_forward.1} parent=11 // pred_region
        _
      $region32: #{sapp_forward.1} parent=11 // pred_fallthru
        _
      // Predicated region
      $region33: #{sapp_forward.1} parent=11 // pred_check
        %p264 = pneg %p206
      $region34: #{sapp_forward.1} parent=11 // pred_check_branch
        %266 = sbr.rel (%p264) target = $region36
      $region35: #{sapp_forward.1} parent=11 // pred_region
        _
      $region36: #{sapp_forward.1} parent=11 // pred_fallthru
        _
    $region12: #{sapp_forward.1} parent=5 // pred_fallthru
      _
    %p267 = scmp.lt.s32.totalorder %s14, 2
    // Predicated region
    $region37: #{sapp_forward.1} parent=5 // pred_check
      %p268 = pneg %p267
    $region38: #{sapp_forward.1} parent=5 // pred_check_branch
      %270 = sbr.rel (%p268) target = $region40
    $region39: #{sapp_forward.1} parent=5 // pred_region
      // Predicated region
      $region41: #{sapp_forward.1} parent=39 // pred_check
        %p271 = pneg %p48
      $region42: #{sapp_forward.1} parent=39 // pred_check_branch
        %273 = sbr.rel (%p271) target = $region44
      $region43: #{sapp_forward.1} parent=39 // pred_region
        %p274 = scmp.lt.s32.totalorder %s21, 1
        %s275 = scalar_select %p274, %s21, 1
        %p276 = scmp.lt.s32.totalorder %s22, 0
        %s277 = scalar_select %p276, %s22, 0
        %s278 = sadd.s32 %s277, %s275
        %s279 = smul.addr %s278, 4
        %s280 = scalar_lea.vmem %s0, %s279
      $region44: #{sapp_forward.1} parent=39 // pred_fallthru
        _
      // Predicated region
      $region45: #{sapp_forward.1} parent=39 // pred_check
        %p281 = pneg %p74
      $region46: #{sapp_forward.1} parent=39 // pred_check_branch
        %283 = sbr.rel (%p281) target = $region48
      $region47: #{sapp_forward.1} parent=39 // pred_region
        %p284 = scmp.lt.s32.totalorder %s21, 1
        %s285 = scalar_select %p284, %s21, 1
        %s286 = smul.addr %s285, 2
        %s287 = smul.addr %s286, 8
        %s288 = scalar_lea.vmem %s1, %s287
      $region48: #{sapp_forward.1} parent=39 // pred_fallthru
        _
    $region40: #{sapp_forward.1} parent=5 // pred_fallthru
      _
    %p289 = scmp.le.s32.totalorder 1, %s14
    %p290 = scmp.lt.s32.totalorder %s14, 3
    %p291 = pnand %p289, %p290
    %p292 = pneg %p291
    // Predicated region
    $region49: #{sapp_forward.1} parent=5 // pred_check
      _
    $region50: #{sapp_forward.1} parent=5 // pred_check_branch
      %294 = sbr.rel (%p291) target = $region52
    $region51: #{sapp_forward.1} parent=5 // pred_region
      %s295 = ssub.s32 %s14, 1
      %p296 = scmp.lt.s32.totalorder %s23, 1
      %s297 = scalar_select %p296, %s23, 1
      %p298 = scmp.lt.s32.totalorder %s24, 0
      %s299 = scalar_select %p298, %s24, 0
      %s300 = sadd.s32 %s299, %s297
      %s301 = smul.addr %s300, 4
      %s302 = scalar_lea.vmem %s0, %s301
      %p303 = pneg %p54
      %p304 = pneg %p51
      %p305 = scmp.lt.s32.totalorder %s23, 1
      %s306 = scalar_select %p305, %s23, 1
      %s307 = smul.addr %s306, 2
      %s308 = smul.addr %s307, 8
      %s309 = scalar_lea.vmem %s1, %s308
      %p310 = pneg %p80
      %p311 = pneg %p77
      %p312 = pneg %p101
      %p313 = pneg %p98
      %p314 = pneg %p122
      %p315 = pneg %p119
      %p316 = pneg %p143
      %p317 = pneg %p140
      %p318 = pneg %p164
      %p319 = pneg %p161
      %p320 = pneg %p185
      %p321 = pneg %p182
      %p322 = pneg %p206
      %p323 = pneg %p203
      %p324 = pneg %p234
      %p325 = pneg %p231
      %p326 = scmp.lt.s32.totalorder %s23, 1
      %s327 = scalar_select %p326, %s23, 1
      %p328 = scmp.lt.s32.totalorder %s24, 0
      %s329 = scalar_select %p328, %s24, 0
      %s330 = smul.addr %s327, 8
      %s331 = sadd.s32 %s329, %s330
      %s332 = smul.addr %s331, 8
      %s333 = scalar_lea.vmem %s8, %s332
      %p334 = scmp.lt.s32.totalorder %s23, 1
      %s335 = scalar_select %p334, %s23, 1
      %p336 = scmp.lt.s32.totalorder %s24, 0
      %s337 = scalar_select %p336, %s24, 0
      %s338 = sadd.s32 %s337, %s335
      %s339 = smul.addr %s338, 4
      %s340 = scalar_lea.vmem %s0, %s339
      %p341 = scmp.lt.s32.totalorder %s23, 1
      %s342 = scalar_select %p341, %s23, 1
      %s343 = smul.addr %s342, 2
      %s344 = smul.addr %s343, 8
      %s345 = scalar_lea.vmem %s1, %s344
      %p346 = scmp.lt.s32.totalorder %s23, 1
      %s347 = scalar_select %p346, %s23, 1
      %p348 = scmp.lt.s32.totalorder %s24, 0
      %s349 = scalar_select %p348, %s24, 0
      %s350 = smul.addr %s347, 8
      %s351 = sadd.s32 %s349, %s350
      %s352 = smul.addr %s351, 8
      %s353 = scalar_lea.vmem %s8, %s352
      %v354 = vld [vmem:[%s340] sm:$0x7]
      %v355 = vld [vmem:[%s345] sm:$0xff]
      %v356 = vld [vmem:[%s345 + $0x8] sm:$0xff]
      %v357 = vld [vmem:[%s2] sm:$0xff]
      %v358 = vld [vmem:[%s2 + $0x8] sm:$0xff]
      %v359 = vld [vmem:[%s3] sm:$0xff]
      %v360 = vld [vmem:[%s3 + $0x8] sm:$0xff]
      %v361 = vld [vmem:[%s4] sm:$0xff]
      %v362 = vld [vmem:[%s4 + $0x8] sm:$0xff]
      %v363 = vld [vmem:[%s4 + $0x10] sm:$0xff]
      %v364 = vld [vmem:[%s4 + $0x18] sm:$0xff]
      %v365 = vld [vmem:[%s5] sm:$0xff]
      %v366 = vld [vmem:[%s5 + $0x8] sm:$0xff]
      %v367 = vld [vmem:[%s5 + $0x10] sm:$0xff]
      %v368 = vld [vmem:[%s5 + $0x18] sm:$0xff]
      %v369 = vld [vmem:[%s6] sm:$0xff]
      %v370 = vld [vmem:[%s6 + $0x8] sm:$0xff]
      %v371 = vld [vmem:[%s6 + $0x10] sm:$0xff]
      %v372 = vld [vmem:[%s6 + $0x18] sm:$0xff]
      %v373 = vld [vmem:[%s6 + $0x20] sm:$0xff]
      %v374 = vld [vmem:[%s6 + $0x28] sm:$0xff]
      %v375 = vld [vmem:[%s6 + $0x30] sm:$0xff]
      %v376 = vld [vmem:[%s6 + $0x38] sm:$0xff]
      %v377 = vld [vmem:[%s7] sm:$0xff]
      %v378 = vld [vmem:[%s7 + $0x8] sm:$0xff]
      %v379 = vld [vmem:[%s7 + $0x10] sm:$0xff]
      %v380 = vld [vmem:[%s7 + $0x18] sm:$0xff]
      %v381 = vld [vmem:[%s7 + $0x20] sm:$0xff]
      %v382 = vld [vmem:[%s7 + $0x28] sm:$0xff]
      %v383 = vld [vmem:[%s7 + $0x30] sm:$0xff]
      %v384 = vld [vmem:[%s7 + $0x38] sm:$0xff]
      %386 = vset.pattern.permute.xlu0 0
      %387 = vperm.xlu0 %386, %v355
      %v388 = vpop.permute.xlu0 %387
      %391 = vset.pattern.permute.xlu0 0
      %392 = vperm.xlu0 %391, %v356
      %v393 = vpop.permute.xlu0 %392
      %v395 = vperm.slane %v354, 0
      %v396 = vsub.f32 %v388, %v395
      %v397 = vsub.f32 %v393, %v395
      %v398 = vmul.f32 %v396, %v396
      %v399 = vmul.f32 %v397, %v397
      %v400 = vadd.f32 %v398, 0.0
      %v401 = vadd.f32 %v399, 0.0
      %402 = vset.pattern.permute.xlu0 1
      %403 = vperm.xlu0 %402, %v355
      %v404 = vpop.permute.xlu0 %403
      %406 = vset.pattern.permute.xlu0 1
      %407 = vperm.xlu0 %406, %v356
      %v408 = vpop.permute.xlu0 %407
      %v410 = vperm.slane %v354, 1
      %v411 = vsub.f32 %v404, %v410
      %v412 = vsub.f32 %v408, %v410
      %v413 = vmul.f32 %v411, %v411
      %v414 = vmul.f32 %v412, %v412
      %v415 = vadd.f32 %v400, %v413
      %v416 = vadd.f32 %v401, %v414
      %417 = vset.pattern.permute.xlu0 2
      %418 = vperm.xlu0 %417, %v355
      %v419 = vpop.permute.xlu0 %418
      %421 = vset.pattern.permute.xlu0 2
      %422 = vperm.xlu0 %421, %v356
      %v423 = vpop.permute.xlu0 %422
      %v425 = vperm.slane %v354, 2
      %v426 = vsub.f32 %v419, %v425
      %v427 = vsub.f32 %v423, %v425
      %v428 = vmul.f32 %v426, %v426
      %v429 = vmul.f32 %v427, %v427
      %v430 = vadd.f32 %v415, %v428
      %v431 = vadd.f32 %v416, %v429
      %v432 = vlaneseq
      %v433 = vshrl.u32 %v432, 7
      %v434 = vadd.s32 %v433, 8
      %v435 = vcvt.s32.f32 %v433
      %v436 = vcvt.s32.f32 %v434
      %vm437 = vcmask 130048
      %v438 = vsel %vm437, %v430, inf
      %v439 = vsel %vm437, %v431, inf
      %v440 = vmin.f32 %v438, %v439
      %v441 = vrot.slane %v440, 4
      %v442 = vmin.f32 %v440, %v441
      %v443 = vrot.slane %v442, 2
      %v444 = vmin.f32 %v442, %v443
      %v445 = vrot.slane %v444, 1
      %v446 = vmin.f32 %v444, %v445
      %vm447 = vcmp.le.f32.partialorder %v430, %v446
      %vm448 = vcmp.le.f32.partialorder %v431, %v446
      %v449 = vsel %vm447, %v435, 16.0
      %v450 = vsel %vm448, %v436, 16.0
      %v451 = vsel %vm437, %v449, inf
      %v452 = vsel %vm437, %v450, inf
      %v453 = vmin.f32 %v451, %v452
      %v454 = vrot.slane %v453, 4
      %v455 = vmin.f32 %v453, %v454
      %v456 = vrot.slane %v455, 2
      %v457 = vmin.f32 %v455, %v456
      %v458 = vrot.slane %v457, 1
      %v459 = vmin.f32 %v457, %v458
      %vm460 = vcmp.eq.f32.partialorder %v435, %v459
      %vm461 = vcmp.eq.f32.partialorder %v436, %v459
      %v462 = vsel %vm460, %v388, 0.0
      %v463 = vsel %vm461, %v393, 0.0
      %v464 = vsel %vm437, %v462, 0.0
      %v465 = vsel %vm437, %v463, 0.0
      %v466 = vadd.f32 %v464, %v465
      %v467 = vrot.slane %v466, 4
      %v468 = vadd.f32 %v466, %v467
      %v469 = vrot.slane %v468, 2
      %v470 = vadd.f32 %v468, %v469
      %v471 = vrot.slane %v470, 1
      %v472 = vadd.f32 %v470, %v471
      %v473 = vsub.f32 %v472, %v354
      %475 = vset.pattern.permute.xlu0 0
      %476 = vperm.xlu0 %475, %v357
      %v477 = vpop.permute.xlu0 %476
      %480 = vset.pattern.permute.xlu0 0
      %481 = vperm.xlu0 %480, %v358
      %v482 = vpop.permute.xlu0 %481
      %v484 = vperm.slane %v473, 0
      %v485 = vmul.f32 %v477, %v484
      %v486 = vmul.f32 %v482, %v484
      %488 = vset.pattern.permute.xlu0 0
      %489 = vperm.xlu0 %488, %v359
      %v490 = vpop.permute.xlu0 %489
      %493 = vset.pattern.permute.xlu0 0
      %494 = vperm.xlu0 %493, %v360
      %v495 = vpop.permute.xlu0 %494
      %v497 = vadd.f32 %v490, %v485
      %v498 = vadd.f32 %v495, %v486
      %v499 = vsel %vm460, %v404, 0.0
      %v500 = vsel %vm461, %v408, 0.0
      %v501 = vsel %vm437, %v499, 0.0
      %v502 = vsel %vm437, %v500, 0.0
      %v503 = vadd.f32 %v501, %v502
      %v504 = vrot.slane %v503, 4
      %v505 = vadd.f32 %v503, %v504
      %v506 = vrot.slane %v505, 2
      %v507 = vadd.f32 %v505, %v506
      %v508 = vrot.slane %v507, 1
      %v509 = vadd.f32 %v507, %v508
      %v510 = vsub.f32 %v509, %v354
      %511 = vset.pattern.permute.xlu0 1
      %512 = vperm.xlu0 %511, %v357
      %v513 = vpop.permute.xlu0 %512
      %515 = vset.pattern.permute.xlu0 1
      %516 = vperm.xlu0 %515, %v358
      %v517 = vpop.permute.xlu0 %516
      %v519 = vperm.slane %v510, 1
      %v520 = vmul.f32 %v513, %v519
      %v521 = vmul.f32 %v517, %v519
      %v522 = vadd.f32 %v497, %v520
      %v523 = vadd.f32 %v498, %v521
      %v524 = vsel %vm460, %v419, 0.0
      %v525 = vsel %vm461, %v423, 0.0
      %v526 = vsel %vm437, %v524, 0.0
      %v527 = vsel %vm437, %v525, 0.0
      %v528 = vadd.f32 %v526, %v527
      %v529 = vrot.slane %v528, 4
      %v530 = vadd.f32 %v528, %v529
      %v531 = vrot.slane %v530, 2
      %v532 = vadd.f32 %v530, %v531
      %v533 = vrot.slane %v532, 1
      %v534 = vadd.f32 %v532, %v533
      %v535 = vsub.f32 %v534, %v354
      %536 = vset.pattern.permute.xlu0 2
      %537 = vperm.xlu0 %536, %v357
      %v538 = vpop.permute.xlu0 %537
      %540 = vset.pattern.permute.xlu0 2
      %541 = vperm.xlu0 %540, %v358
      %v542 = vpop.permute.xlu0 %541
      %v544 = vperm.slane %v535, 2
      %v545 = vmul.f32 %v538, %v544
      %v546 = vmul.f32 %v542, %v544
      %v547 = vadd.f32 %v522, %v545
      %v548 = vadd.f32 %v523, %v546
      %v549 = vmax.f32 %v547, 0.0
      %v550 = vmax.f32 %v548, 0.0
      %v551 = vsel %vm460, inf, %v430
      %v552 = vsel %vm461, inf, %v431
      %v553 = vsel %vm437, %v551, inf
      %v554 = vsel %vm437, %v552, inf
      %v555 = vmin.f32 %v553, %v554
      %v556 = vrot.slane %v555, 4
      %v557 = vmin.f32 %v555, %v556
      %v558 = vrot.slane %v557, 2
      %v559 = vmin.f32 %v557, %v558
      %v560 = vrot.slane %v559, 1
      %v561 = vmin.f32 %v559, %v560
      %vm562 = vcmp.le.f32.partialorder %v551, %v561
      %vm563 = vcmp.le.f32.partialorder %v552, %v561
      %v564 = vsel %vm562, %v435, 16.0
      %v565 = vsel %vm563, %v436, 16.0
      %v566 = vsel %vm437, %v564, inf
      %v567 = vsel %vm437, %v565, inf
      %v568 = vmin.f32 %v566, %v567
      %v569 = vrot.slane %v568, 4
      %v570 = vmin.f32 %v568, %v569
      %v571 = vrot.slane %v570, 2
      %v572 = vmin.f32 %v570, %v571
      %v573 = vrot.slane %v572, 1
      %v574 = vmin.f32 %v572, %v573
      %vm575 = vcmp.eq.f32.partialorder %v435, %v574
      %vm576 = vcmp.eq.f32.partialorder %v436, %v574
      %v577 = vsel %vm575, %v388, 0.0
      %v578 = vsel %vm576, %v393, 0.0
      %v579 = vsel %vm437, %v577, 0.0
      %v580 = vsel %vm437, %v578, 0.0
      %v581 = vadd.f32 %v579, %v580
      %v582 = vrot.slane %v581, 4
      %v583 = vadd.f32 %v581, %v582
      %v584 = vrot.slane %v583, 2
      %v585 = vadd.f32 %v583, %v584
      %v586 = vrot.slane %v585, 1
      %v587 = vadd.f32 %v585, %v586
      %v588 = vsub.f32 %v587, %v354
      %v589 = vperm.slane %v588, 0
      %v590 = vmul.f32 %v477, %v589
      %v591 = vmul.f32 %v482, %v589
      %v592 = vadd.f32 %v490, %v590
      %v593 = vadd.f32 %v495, %v591
      %v594 = vsel %vm575, %v404, 0.0
      %v595 = vsel %vm576, %v408, 0.0
      %v596 = vsel %vm437, %v594, 0.0
      %v597 = vsel %vm437, %v595, 0.0
      %v598 = vadd.f32 %v596, %v597
      %v599 = vrot.slane %v598, 4
      %v600 = vadd.f32 %v598, %v599
      %v601 = vrot.slane %v600, 2
      %v602 = vadd.f32 %v600, %v601
      %v603 = vrot.slane %v602, 1
      %v604 = vadd.f32 %v602, %v603
      %v605 = vsub.f32 %v604, %v354
      %v606 = vperm.slane %v605, 1
      %v607 = vmul.f32 %v513, %v606
      %v608 = vmul.f32 %v517, %v606
      %v609 = vadd.f32 %v592, %v607
      %v610 = vadd.f32 %v593, %v608
      %v611 = vsel %vm575, %v419, 0.0
      %v612 = vsel %vm576, %v423, 0.0
      %v613 = vsel %vm437, %v611, 0.0
      %v614 = vsel %vm437, %v612, 0.0
      %v615 = vadd.f32 %v613, %v614
      %v616 = vrot.slane %v615, 4
      %v617 = vadd.f32 %v615, %v616
      %v618 = vrot.slane %v617, 2
      %v619 = vadd.f32 %v617, %v618
      %v620 = vrot.slane %v619, 1
      %v621 = vadd.f32 %v619, %v620
      %v622 = vsub.f32 %v621, %v354
      %v623 = vperm.slane %v622, 2
      %v624 = vmul.f32 %v538, %v623
      %v625 = vmul.f32 %v542, %v623
      %v626 = vadd.f32 %v609, %v624
      %v627 = vadd.f32 %v610, %v625
      %v628 = vmax.f32 %v626, 0.0
      %v629 = vmax.f32 %v627, 0.0
      %v630 = vsel %vm575, inf, %v551
      %v631 = vsel %vm576, inf, %v552
      %v632 = vsel %vm437, %v630, inf
      %v633 = vsel %vm437, %v631, inf
      %v634 = vmin.f32 %v632, %v633
      %v635 = vrot.slane %v634, 4
      %v636 = vmin.f32 %v634, %v635
      %v637 = vrot.slane %v636, 2
      %v638 = vmin.f32 %v636, %v637
      %v639 = vrot.slane %v638, 1
      %v640 = vmin.f32 %v638, %v639
      %vm641 = vcmp.le.f32.partialorder %v630, %v640
      %vm642 = vcmp.le.f32.partialorder %v631, %v640
      %v643 = vsel %vm641, %v435, 16.0
      %v644 = vsel %vm642, %v436, 16.0
      %v645 = vsel %vm437, %v643, inf
      %v646 = vsel %vm437, %v644, inf
      %v647 = vmin.f32 %v645, %v646
      %v648 = vrot.slane %v647, 4
      %v649 = vmin.f32 %v647, %v648
      %v650 = vrot.slane %v649, 2
      %v651 = vmin.f32 %v649, %v650
      %v652 = vrot.slane %v651, 1
      %v653 = vmin.f32 %v651, %v652
      %vm654 = vcmp.eq.f32.partialorder %v435, %v653
      %vm655 = vcmp.eq.f32.partialorder %v436, %v653
      %v656 = vsel %vm654, %v388, 0.0
      %v657 = vsel %vm655, %v393, 0.0
      %v658 = vsel %vm437, %v656, 0.0
      %v659 = vsel %vm437, %v657, 0.0
      %v660 = vadd.f32 %v658, %v659
      %v661 = vrot.slane %v660, 4
      %v662 = vadd.f32 %v660, %v661
      %v663 = vrot.slane %v662, 2
      %v664 = vadd.f32 %v662, %v663
      %v665 = vrot.slane %v664, 1
      %v666 = vadd.f32 %v664, %v665
      %v667 = vsub.f32 %v666, %v354
      %v668 = vperm.slane %v667, 0
      %v669 = vmul.f32 %v477, %v668
      %v670 = vmul.f32 %v482, %v668
      %v671 = vadd.f32 %v490, %v669
      %v672 = vadd.f32 %v495, %v670
      %v673 = vsel %vm654, %v404, 0.0
      %v674 = vsel %vm655, %v408, 0.0
      %v675 = vsel %vm437, %v673, 0.0
      %v676 = vsel %vm437, %v674, 0.0
      %v677 = vadd.f32 %v675, %v676
      %v678 = vrot.slane %v677, 4
      %v679 = vadd.f32 %v677, %v678
      %v680 = vrot.slane %v679, 2
      %v681 = vadd.f32 %v679, %v680
      %v682 = vrot.slane %v681, 1
      %v683 = vadd.f32 %v681, %v682
      %v684 = vsub.f32 %v683, %v354
      %v685 = vperm.slane %v684, 1
      %v686 = vmul.f32 %v513, %v685
      %v687 = vmul.f32 %v517, %v685
      %v688 = vadd.f32 %v671, %v686
      %v689 = vadd.f32 %v672, %v687
      %v690 = vsel %vm654, %v419, 0.0
      %v691 = vsel %vm655, %v423, 0.0
      %v692 = vsel %vm437, %v690, 0.0
      %v693 = vsel %vm437, %v691, 0.0
      %v694 = vadd.f32 %v692, %v693
      %v695 = vrot.slane %v694, 4
      %v696 = vadd.f32 %v694, %v695
      %v697 = vrot.slane %v696, 2
      %v698 = vadd.f32 %v696, %v697
      %v699 = vrot.slane %v698, 1
      %v700 = vadd.f32 %v698, %v699
      %v701 = vsub.f32 %v700, %v354
      %v702 = vperm.slane %v701, 2
      %v703 = vmul.f32 %v538, %v702
      %v704 = vmul.f32 %v542, %v702
      %v705 = vadd.f32 %v688, %v703
      %v706 = vadd.f32 %v689, %v704
      %v707 = vmax.f32 %v705, 0.0
      %v708 = vmax.f32 %v706, 0.0
      %v709 = vsel %vm654, inf, %v630
      %v710 = vsel %vm655, inf, %v631
      %v711 = vsel %vm437, %v709, inf
      %v712 = vsel %vm437, %v710, inf
      %v713 = vmin.f32 %v711, %v712
      %v714 = vrot.slane %v713, 4
      %v715 = vmin.f32 %v713, %v714
      %v716 = vrot.slane %v715, 2
      %v717 = vmin.f32 %v715, %v716
      %v718 = vrot.slane %v717, 1
      %v719 = vmin.f32 %v717, %v718
      %vm720 = vcmp.le.f32.partialorder %v709, %v719
      %vm721 = vcmp.le.f32.partialorder %v710, %v719
      %v722 = vsel %vm720, %v435, 16.0
      %v723 = vsel %vm721, %v436, 16.0
      %v724 = vsel %vm437, %v722, inf
      %v725 = vsel %vm437, %v723, inf
      %v726 = vmin.f32 %v724, %v725
      %v727 = vrot.slane %v726, 4
      %v728 = vmin.f32 %v726, %v727
      %v729 = vrot.slane %v728, 2
      %v730 = vmin.f32 %v728, %v729
      %v731 = vrot.slane %v730, 1
      %v732 = vmin.f32 %v730, %v731
      %vm733 = vcmp.eq.f32.partialorder %v435, %v732
      %vm734 = vcmp.eq.f32.partialorder %v436, %v732
      %v735 = vsel %vm733, %v388, 0.0
      %v736 = vsel %vm734, %v393, 0.0
      %v737 = vsel %vm437, %v735, 0.0
      %v738 = vsel %vm437, %v736, 0.0
      %v739 = vadd.f32 %v737, %v738
      %v740 = vrot.slane %v739, 4
      %v741 = vadd.f32 %v739, %v740
      %v742 = vrot.slane %v741, 2
      %v743 = vadd.f32 %v741, %v742
      %v744 = vrot.slane %v743, 1
      %v745 = vadd.f32 %v743, %v744
      %v746 = vsub.f32 %v745, %v354
      %v747 = vperm.slane %v746, 0
      %v748 = vmul.f32 %v477, %v747
      %v749 = vmul.f32 %v482, %v747
      %v750 = vadd.f32 %v490, %v748
      %v751 = vadd.f32 %v495, %v749
      %v752 = vsel %vm733, %v404, 0.0
      %v753 = vsel %vm734, %v408, 0.0
      %v754 = vsel %vm437, %v752, 0.0
      %v755 = vsel %vm437, %v753, 0.0
      %v756 = vadd.f32 %v754, %v755
      %v757 = vrot.slane %v756, 4
      %v758 = vadd.f32 %v756, %v757
      %v759 = vrot.slane %v758, 2
      %v760 = vadd.f32 %v758, %v759
      %v761 = vrot.slane %v760, 1
      %v762 = vadd.f32 %v760, %v761
      %v763 = vsub.f32 %v762, %v354
      %v764 = vperm.slane %v763, 1
      %v765 = vmul.f32 %v513, %v764
      %v766 = vmul.f32 %v517, %v764
      %v767 = vadd.f32 %v750, %v765
      %v768 = vadd.f32 %v751, %v766
      %v769 = vsel %vm733, %v419, 0.0
      %v770 = vsel %vm734, %v423, 0.0
      %v771 = vsel %vm437, %v769, 0.0
      %v772 = vsel %vm437, %v770, 0.0
      %v773 = vadd.f32 %v771, %v772
      %v774 = vrot.slane %v773, 4
      %v775 = vadd.f32 %v773, %v774
      %v776 = vrot.slane %v775, 2
      %v777 = vadd.f32 %v775, %v776
      %v778 = vrot.slane %v777, 1
      %v779 = vadd.f32 %v777, %v778
      %v780 = vsub.f32 %v779, %v354
      %v781 = vperm.slane %v780, 2
      %v782 = vmul.f32 %v538, %v781
      %v783 = vmul.f32 %v542, %v781
      %v784 = vadd.f32 %v767, %v782
      %v785 = vadd.f32 %v768, %v783
      %v786 = vmax.f32 %v784, 0.0
      %v787 = vmax.f32 %v785, 0.0
      %v788 = vsel %vm733, inf, %v709
      %v789 = vsel %vm734, inf, %v710
      %v790 = vsel %vm437, %v788, inf
      %v791 = vsel %vm437, %v789, inf
      %v792 = vmin.f32 %v790, %v791
      %v793 = vrot.slane %v792, 4
      %v794 = vmin.f32 %v792, %v793
      %v795 = vrot.slane %v794, 2
      %v796 = vmin.f32 %v794, %v795
      %v797 = vrot.slane %v796, 1
      %v798 = vmin.f32 %v796, %v797
      %vm799 = vcmp.le.f32.partialorder %v788, %v798
      %vm800 = vcmp.le.f32.partialorder %v789, %v798
      %v801 = vsel %vm799, %v435, 16.0
      %v802 = vsel %vm800, %v436, 16.0
      %v803 = vsel %vm437, %v801, inf
      %v804 = vsel %vm437, %v802, inf
      %v805 = vmin.f32 %v803, %v804
      %v806 = vrot.slane %v805, 4
      %v807 = vmin.f32 %v805, %v806
      %v808 = vrot.slane %v807, 2
      %v809 = vmin.f32 %v807, %v808
      %v810 = vrot.slane %v809, 1
      %v811 = vmin.f32 %v809, %v810
      %vm812 = vcmp.eq.f32.partialorder %v435, %v811
      %vm813 = vcmp.eq.f32.partialorder %v436, %v811
      %v814 = vsel %vm812, %v388, 0.0
      %v815 = vsel %vm813, %v393, 0.0
      %v816 = vsel %vm437, %v814, 0.0
      %v817 = vsel %vm437, %v815, 0.0
      %v818 = vadd.f32 %v816, %v817
      %v819 = vrot.slane %v818, 4
      %v820 = vadd.f32 %v818, %v819
      %v821 = vrot.slane %v820, 2
      %v822 = vadd.f32 %v820, %v821
      %v823 = vrot.slane %v822, 1
      %v824 = vadd.f32 %v822, %v823
      %v825 = vsub.f32 %v824, %v354
      %v826 = vperm.slane %v825, 0
      %v827 = vmul.f32 %v477, %v826
      %v828 = vmul.f32 %v482, %v826
      %v829 = vadd.f32 %v490, %v827
      %v830 = vadd.f32 %v495, %v828
      %v831 = vsel %vm812, %v404, 0.0
      %v832 = vsel %vm813, %v408, 0.0
      %v833 = vsel %vm437, %v831, 0.0
      %v834 = vsel %vm437, %v832, 0.0
      %v835 = vadd.f32 %v833, %v834
      %v836 = vrot.slane %v835, 4
      %v837 = vadd.f32 %v835, %v836
      %v838 = vrot.slane %v837, 2
      %v839 = vadd.f32 %v837, %v838
      %v840 = vrot.slane %v839, 1
      %v841 = vadd.f32 %v839, %v840
      %v842 = vsub.f32 %v841, %v354
      %v843 = vperm.slane %v842, 1
      %v844 = vmul.f32 %v513, %v843
      %v845 = vmul.f32 %v517, %v843
      %v846 = vadd.f32 %v829, %v844
      %v847 = vadd.f32 %v830, %v845
      %v848 = vsel %vm812, %v419, 0.0
      %v849 = vsel %vm813, %v423, 0.0
      %v850 = vsel %vm437, %v848, 0.0
      %v851 = vsel %vm437, %v849, 0.0
      %v852 = vadd.f32 %v850, %v851
      %v853 = vrot.slane %v852, 4
      %v854 = vadd.f32 %v852, %v853
      %v855 = vrot.slane %v854, 2
      %v856 = vadd.f32 %v854, %v855
      %v857 = vrot.slane %v856, 1
      %v858 = vadd.f32 %v856, %v857
      %v859 = vsub.f32 %v858, %v354
      %v860 = vperm.slane %v859, 2
      %v861 = vmul.f32 %v538, %v860
      %v862 = vmul.f32 %v542, %v860
      %v863 = vadd.f32 %v846, %v861
      %v864 = vadd.f32 %v847, %v862
      %v865 = vmax.f32 %v863, 0.0
      %v866 = vmax.f32 %v864, 0.0
      %v867 = vsel %vm812, inf, %v788
      %v868 = vsel %vm813, inf, %v789
      %v869 = vsel %vm437, %v867, inf
      %v870 = vsel %vm437, %v868, inf
      %v871 = vmin.f32 %v869, %v870
      %v872 = vrot.slane %v871, 4
      %v873 = vmin.f32 %v871, %v872
      %v874 = vrot.slane %v873, 2
      %v875 = vmin.f32 %v873, %v874
      %v876 = vrot.slane %v875, 1
      %v877 = vmin.f32 %v875, %v876
      %vm878 = vcmp.le.f32.partialorder %v867, %v877
      %vm879 = vcmp.le.f32.partialorder %v868, %v877
      %v880 = vsel %vm878, %v435, 16.0
      %v881 = vsel %vm879, %v436, 16.0
      %v882 = vsel %vm437, %v880, inf
      %v883 = vsel %vm437, %v881, inf
      %v884 = vmin.f32 %v882, %v883
      %v885 = vrot.slane %v884, 4
      %v886 = vmin.f32 %v884, %v885
      %v887 = vrot.slane %v886, 2
      %v888 = vmin.f32 %v886, %v887
      %v889 = vrot.slane %v888, 1
      %v890 = vmin.f32 %v888, %v889
      %vm891 = vcmp.eq.f32.partialorder %v435, %v890
      %vm892 = vcmp.eq.f32.partialorder %v436, %v890
      %v893 = vsel %vm891, %v388, 0.0
      %v894 = vsel %vm892, %v393, 0.0
      %v895 = vsel %vm437, %v893, 0.0
      %v896 = vsel %vm437, %v894, 0.0
      %v897 = vadd.f32 %v895, %v896
      %v898 = vrot.slane %v897, 4
      %v899 = vadd.f32 %v897, %v898
      %v900 = vrot.slane %v899, 2
      %v901 = vadd.f32 %v899, %v900
      %v902 = vrot.slane %v901, 1
      %v903 = vadd.f32 %v901, %v902
      %v904 = vsub.f32 %v903, %v354
      %v905 = vperm.slane %v904, 0
      %v906 = vmul.f32 %v477, %v905
      %v907 = vmul.f32 %v482, %v905
      %v908 = vadd.f32 %v490, %v906
      %v909 = vadd.f32 %v495, %v907
      %v910 = vsel %vm891, %v404, 0.0
      %v911 = vsel %vm892, %v408, 0.0
      %v912 = vsel %vm437, %v910, 0.0
      %v913 = vsel %vm437, %v911, 0.0
      %v914 = vadd.f32 %v912, %v913
      %v915 = vrot.slane %v914, 4
      %v916 = vadd.f32 %v914, %v915
      %v917 = vrot.slane %v916, 2
      %v918 = vadd.f32 %v916, %v917
      %v919 = vrot.slane %v918, 1
      %v920 = vadd.f32 %v918, %v919
      %v921 = vsub.f32 %v920, %v354
      %v922 = vperm.slane %v921, 1
      %v923 = vmul.f32 %v513, %v922
      %v924 = vmul.f32 %v517, %v922
      %v925 = vadd.f32 %v908, %v923
      %v926 = vadd.f32 %v909, %v924
      %v927 = vsel %vm891, %v419, 0.0
      %v928 = vsel %vm892, %v423, 0.0
      %v929 = vsel %vm437, %v927, 0.0
      %v930 = vsel %vm437, %v928, 0.0
      %v931 = vadd.f32 %v929, %v930
      %v932 = vrot.slane %v931, 4
      %v933 = vadd.f32 %v931, %v932
      %v934 = vrot.slane %v933, 2
      %v935 = vadd.f32 %v933, %v934
      %v936 = vrot.slane %v935, 1
      %v937 = vadd.f32 %v935, %v936
      %v938 = vsub.f32 %v937, %v354
      %v939 = vperm.slane %v938, 2
      %v940 = vmul.f32 %v538, %v939
      %v941 = vmul.f32 %v542, %v939
      %v942 = vadd.f32 %v925, %v940
      %v943 = vadd.f32 %v926, %v941
      %v944 = vmax.f32 %v942, 0.0
      %v945 = vmax.f32 %v943, 0.0
      %v946 = vsel %vm891, inf, %v867
      %v947 = vsel %vm892, inf, %v868
      %v948 = vsel %vm437, %v946, inf
      %v949 = vsel %vm437, %v947, inf
      %v950 = vmin.f32 %v948, %v949
      %v951 = vrot.slane %v950, 4
      %v952 = vmin.f32 %v950, %v951
      %v953 = vrot.slane %v952, 2
      %v954 = vmin.f32 %v952, %v953
      %v955 = vrot.slane %v954, 1
      %v956 = vmin.f32 %v954, %v955
      %vm957 = vcmp.le.f32.partialorder %v946, %v956
      %vm958 = vcmp.le.f32.partialorder %v947, %v956
      %v959 = vsel %vm957, %v435, 16.0
      %v960 = vsel %vm958, %v436, 16.0
      %v961 = vsel %vm437, %v959, inf
      %v962 = vsel %vm437, %v960, inf
      %v963 = vmin.f32 %v961, %v962
      %v964 = vrot.slane %v963, 4
      %v965 = vmin.f32 %v963, %v964
      %v966 = vrot.slane %v965, 2
      %v967 = vmin.f32 %v965, %v966
      %v968 = vrot.slane %v967, 1
      %v969 = vmin.f32 %v967, %v968
      %vm970 = vcmp.eq.f32.partialorder %v435, %v969
      %vm971 = vcmp.eq.f32.partialorder %v436, %v969
      %v972 = vsel %vm970, %v388, 0.0
      %v973 = vsel %vm971, %v393, 0.0
      %v974 = vsel %vm437, %v972, 0.0
      %v975 = vsel %vm437, %v973, 0.0
      %v976 = vadd.f32 %v974, %v975
      %v977 = vrot.slane %v976, 4
      %v978 = vadd.f32 %v976, %v977
      %v979 = vrot.slane %v978, 2
      %v980 = vadd.f32 %v978, %v979
      %v981 = vrot.slane %v980, 1
      %v982 = vadd.f32 %v980, %v981
      %v983 = vsub.f32 %v982, %v354
      %v984 = vperm.slane %v983, 0
      %v985 = vmul.f32 %v477, %v984
      %v986 = vmul.f32 %v482, %v984
      %v987 = vadd.f32 %v490, %v985
      %v988 = vadd.f32 %v495, %v986
      %v989 = vsel %vm970, %v404, 0.0
      %v990 = vsel %vm971, %v408, 0.0
      %v991 = vsel %vm437, %v989, 0.0
      %v992 = vsel %vm437, %v990, 0.0
      %v993 = vadd.f32 %v991, %v992
      %v994 = vrot.slane %v993, 4
      %v995 = vadd.f32 %v993, %v994
      %v996 = vrot.slane %v995, 2
      %v997 = vadd.f32 %v995, %v996
      %v998 = vrot.slane %v997, 1
      %v999 = vadd.f32 %v997, %v998
      %v1000 = vsub.f32 %v999, %v354
      %v1001 = vperm.slane %v1000, 1
      %v1002 = vmul.f32 %v513, %v1001
      %v1003 = vmul.f32 %v517, %v1001
      %v1004 = vadd.f32 %v987, %v1002
      %v1005 = vadd.f32 %v988, %v1003
      %v1006 = vsel %vm970, %v419, 0.0
      %v1007 = vsel %vm971, %v423, 0.0
      %v1008 = vsel %vm437, %v1006, 0.0
      %v1009 = vsel %vm437, %v1007, 0.0
      %v1010 = vadd.f32 %v1008, %v1009
      %v1011 = vrot.slane %v1010, 4
      %v1012 = vadd.f32 %v1010, %v1011
      %v1013 = vrot.slane %v1012, 2
      %v1014 = vadd.f32 %v1012, %v1013
      %v1015 = vrot.slane %v1014, 1
      %v1016 = vadd.f32 %v1014, %v1015
      %v1017 = vsub.f32 %v1016, %v354
      %v1018 = vperm.slane %v1017, 2
      %v1019 = vmul.f32 %v538, %v1018
      %v1020 = vmul.f32 %v542, %v1018
      %v1021 = vadd.f32 %v1004, %v1019
      %v1022 = vadd.f32 %v1005, %v1020
      %v1023 = vmax.f32 %v1021, 0.0
      %v1024 = vmax.f32 %v1022, 0.0
      %v1025 = vsel %vm970, inf, %v946
      %v1026 = vsel %vm971, inf, %v947
      %v1027 = vsel %vm437, %v1025, inf
      %v1028 = vsel %vm437, %v1026, inf
      %v1029 = vmin.f32 %v1027, %v1028
      %v1030 = vrot.slane %v1029, 4
      %v1031 = vmin.f32 %v1029, %v1030
      %v1032 = vrot.slane %v1031, 2
      %v1033 = vmin.f32 %v1031, %v1032
      %v1034 = vrot.slane %v1033, 1
      %v1035 = vmin.f32 %v1033, %v1034
      %vm1036 = vcmp.le.f32.partialorder %v1025, %v1035
      %vm1037 = vcmp.le.f32.partialorder %v1026, %v1035
      %v1038 = vsel %vm1036, %v435, 16.0
      %v1039 = vsel %vm1037, %v436, 16.0
      %v1040 = vsel %vm437, %v1038, inf
      %v1041 = vsel %vm437, %v1039, inf
      %v1042 = vmin.f32 %v1040, %v1041
      %v1043 = vrot.slane %v1042, 4
      %v1044 = vmin.f32 %v1042, %v1043
      %v1045 = vrot.slane %v1044, 2
      %v1046 = vmin.f32 %v1044, %v1045
      %v1047 = vrot.slane %v1046, 1
      %v1048 = vmin.f32 %v1046, %v1047
      %vm1049 = vcmp.eq.f32.partialorder %v435, %v1048
      %vm1050 = vcmp.eq.f32.partialorder %v436, %v1048
      %v1051 = vsel %vm1049, %v388, 0.0
      %v1052 = vsel %vm1050, %v393, 0.0
      %v1053 = vsel %vm437, %v1051, 0.0
      %v1054 = vsel %vm437, %v1052, 0.0
      %v1055 = vadd.f32 %v1053, %v1054
      %v1056 = vrot.slane %v1055, 4
      %v1057 = vadd.f32 %v1055, %v1056
      %v1058 = vrot.slane %v1057, 2
      %v1059 = vadd.f32 %v1057, %v1058
      %v1060 = vrot.slane %v1059, 1
      %v1061 = vadd.f32 %v1059, %v1060
      %v1062 = vsub.f32 %v1061, %v354
      %v1063 = vperm.slane %v1062, 0
      %v1064 = vmul.f32 %v477, %v1063
      %v1065 = vmul.f32 %v482, %v1063
      %v1066 = vadd.f32 %v490, %v1064
      %v1067 = vadd.f32 %v495, %v1065
      %v1068 = vsel %vm1049, %v404, 0.0
      %v1069 = vsel %vm1050, %v408, 0.0
      %v1070 = vsel %vm437, %v1068, 0.0
      %v1071 = vsel %vm437, %v1069, 0.0
      %v1072 = vadd.f32 %v1070, %v1071
      %v1073 = vrot.slane %v1072, 4
      %v1074 = vadd.f32 %v1072, %v1073
      %v1075 = vrot.slane %v1074, 2
      %v1076 = vadd.f32 %v1074, %v1075
      %v1077 = vrot.slane %v1076, 1
      %v1078 = vadd.f32 %v1076, %v1077
      %v1079 = vsub.f32 %v1078, %v354
      %v1080 = vperm.slane %v1079, 1
      %v1081 = vmul.f32 %v513, %v1080
      %v1082 = vmul.f32 %v517, %v1080
      %v1083 = vadd.f32 %v1066, %v1081
      %v1084 = vadd.f32 %v1067, %v1082
      %v1085 = vsel %vm1049, %v419, 0.0
      %v1086 = vsel %vm1050, %v423, 0.0
      %v1087 = vsel %vm437, %v1085, 0.0
      %v1088 = vsel %vm437, %v1086, 0.0
      %v1089 = vadd.f32 %v1087, %v1088
      %v1090 = vrot.slane %v1089, 4
      %v1091 = vadd.f32 %v1089, %v1090
      %v1092 = vrot.slane %v1091, 2
      %v1093 = vadd.f32 %v1091, %v1092
      %v1094 = vrot.slane %v1093, 1
      %v1095 = vadd.f32 %v1093, %v1094
      %v1096 = vsub.f32 %v1095, %v354
      %v1097 = vperm.slane %v1096, 2
      %v1098 = vmul.f32 %v538, %v1097
      %v1099 = vmul.f32 %v542, %v1097
      %v1100 = vadd.f32 %v1083, %v1098
      %v1101 = vadd.f32 %v1084, %v1099
      %v1102 = vmax.f32 %v1100, 0.0
      %v1103 = vmax.f32 %v1101, 0.0
      %1106 = vrot.lane.b32.xlu0 %v628, 16
      %v1107 = vpop.permute.xlu0 %1106
      %1108 = vrot.lane.b32.xlu0 %v629, 16
      %v1109 = vpop.permute.xlu0 %1108
      %1114 = vrot.lane.b32.xlu0 %v707, 32
      %v1115 = vpop.permute.xlu0 %1114
      %1116 = vrot.lane.b32.xlu0 %v708, 32
      %v1117 = vpop.permute.xlu0 %1116
      %1122 = vrot.lane.b32.xlu0 %v786, 48
      %v1123 = vpop.permute.xlu0 %1122
      %1124 = vrot.lane.b32.xlu0 %v787, 48
      %v1125 = vpop.permute.xlu0 %1124
      %1130 = vrot.lane.b32.xlu0 %v865, 64
      %v1131 = vpop.permute.xlu0 %1130
      %1132 = vrot.lane.b32.xlu0 %v866, 64
      %v1133 = vpop.permute.xlu0 %1132
      %1138 = vrot.lane.b32.xlu0 %v944, 80
      %v1139 = vpop.permute.xlu0 %1138
      %1140 = vrot.lane.b32.xlu0 %v945, 80
      %v1141 = vpop.permute.xlu0 %1140
      %1146 = vrot.lane.b32.xlu0 %v1023, 96
      %v1147 = vpop.permute.xlu0 %1146
      %1148 = vrot.lane.b32.xlu0 %v1024, 96
      %v1149 = vpop.permute.xlu0 %1148
      %1154 = vrot.lane.b32.xlu0 %v1102, 112
      %v1155 = vpop.permute.xlu0 %1154
      %1156 = vrot.lane.b32.xlu0 %v1103, 112
      %v1157 = vpop.permute.xlu0 %1156
      %v1160 = vsel %vm437, %v549, %v1107
      %v1161 = vsel %vm437, %v550, %v1109
      %vm1162 = vcmask 261120
      %v1163 = vsel %vm1162, %v1160, %v1115
      %v1164 = vsel %vm1162, %v1161, %v1117
      %vm1165 = vcmask 392192
      %v1166 = vsel %vm1165, %v1163, %v1123
      %v1167 = vsel %vm1165, %v1164, %v1125
      %vm1168 = vcmask 523264
      %v1169 = vsel %vm1168, %v1166, %v1131
      %v1170 = vsel %vm1168, %v1167, %v1133
      %vm1171 = vcmask 654336
      %v1172 = vsel %vm1171, %v1169, %v1139
      %v1173 = vsel %vm1171, %v1170, %v1141
      %vm1174 = vcmask 785408
      %v1175 = vsel %vm1174, %v1172, %v1147
      %v1176 = vsel %vm1174, %v1173, %v1149
      %vm1177 = vcmask 916480
      %v1178 = vsel %vm1177, %v1175, %v1155
      %v1179 = vsel %vm1177, %v1176, %v1157
      %1181 = vset.pattern.permute.xlu0 0
      %1182 = vperm.xlu0 %1181, %v365
      %v1183 = vpop.permute.xlu0 %1182
      %1186 = vset.pattern.permute.xlu0 0
      %1187 = vperm.xlu0 %1186, %v366
      %v1188 = vpop.permute.xlu0 %1187
      %1191 = vset.pattern.permute.xlu0 0
      %1192 = vperm.xlu0 %1191, %v367
      %v1193 = vpop.permute.xlu0 %1192
      %1196 = vset.pattern.permute.xlu0 0
      %1197 = vperm.xlu0 %1196, %v368
      %v1198 = vpop.permute.xlu0 %1197
      %v1201 = vsel %vm437, %v361, 0
      %v1204 = vsel %vm437, %v362, 0
      %v1207 = vsel %vm437, %v363, 0
      %v1210 = vsel %vm437, %v364, 0
      %1212 = vmatpush.msra.mxu0 0.0
      %1213 = vmatpush.msra.mxu0 0.0
      %1214 = vmatpush.msra.mxu0 0.0
      %1215 = vmatpush.msra.mxu0 0.0
      %1216 = vmatpush.msra.mxu0 0.0
      %1217 = vmatpush.msra.mxu0 0.0
      %1218 = vmatpush.msra.mxu0 0.0
      %1219 = vmatpush.msra.mxu0 0.0
      %1220 = vmatpush.msra.mxu0 0.0
      %1221 = vmatpush.msra.mxu0 0.0
      %1222 = vmatpush.msra.mxu0 0.0
      %1223 = vmatpush.msra.mxu0 0.0
      %1224 = vmatpush.msra.mxu0 0.0
      %1225 = vmatpush.msra.mxu0 0.0
      %1226 = vmatpush.msra.mxu0 %v1179
      %1227 = vmatpush.msra.mxu0 %v1178
      %1228 = vmatmul.f32.gmra.mxu0 %v1201
      %v1229 = vpop.f32.mrf.mxu0
      %v1230 = vadd.f32 %v1183, %v1229
      %1231 = vmatmul.f32.gmra.mxu0 %v1204
      %v1232 = vpop.f32.mrf.mxu0
      %v1233 = vadd.f32 %v1188, %v1232
      %1234 = vmatmul.f32.gmra.mxu0 %v1207
      %v1235 = vpop.f32.mrf.mxu0
      %v1236 = vadd.f32 %v1193, %v1235
      %1237 = vmatmul.f32.gmra.mxu0 %v1210
      %v1238 = vpop.f32.mrf.mxu0
      %v1239 = vadd.f32 %v1198, %v1238
      %1240 = vdwg.mxu0
      %v1241 = vmax.f32 %v1230, 0.0
      %v1242 = vmax.f32 %v1233, 0.0
      %v1243 = vmax.f32 %v1236, 0.0
      %v1244 = vmax.f32 %v1239, 0.0
      %1246 = vset.pattern.permute.xlu0 0
      %1247 = vperm.xlu0 %1246, %v377
      %v1248 = vpop.permute.xlu0 %1247
      %1251 = vset.pattern.permute.xlu0 0
      %1252 = vperm.xlu0 %1251, %v378
      %v1253 = vpop.permute.xlu0 %1252
      %1256 = vset.pattern.permute.xlu0 0
      %1257 = vperm.xlu0 %1256, %v379
      %v1258 = vpop.permute.xlu0 %1257
      %1261 = vset.pattern.permute.xlu0 0
      %1262 = vperm.xlu0 %1261, %v380
      %v1263 = vpop.permute.xlu0 %1262
      %1266 = vset.pattern.permute.xlu0 0
      %1267 = vperm.xlu0 %1266, %v381
      %v1268 = vpop.permute.xlu0 %1267
      %1271 = vset.pattern.permute.xlu0 0
      %1272 = vperm.xlu0 %1271, %v382
      %v1273 = vpop.permute.xlu0 %1272
      %1276 = vset.pattern.permute.xlu0 0
      %1277 = vperm.xlu0 %1276, %v383
      %v1278 = vpop.permute.xlu0 %1277
      %1281 = vset.pattern.permute.xlu0 0
      %1282 = vperm.xlu0 %1281, %v384
      %v1283 = vpop.permute.xlu0 %1282
      %v1286 = vsel %vm1162, %v369, 0
      %v1289 = vsel %vm1162, %v370, 0
      %v1292 = vsel %vm1162, %v371, 0
      %v1295 = vsel %vm1162, %v372, 0
      %v1298 = vsel %vm1162, %v373, 0
      %v1301 = vsel %vm1162, %v374, 0
      %v1304 = vsel %vm1162, %v375, 0
      %v1307 = vsel %vm1162, %v376, 0
      %1309 = vmatpush.msra.mxu0 0.0
      %1310 = vmatpush.msra.mxu0 0.0
      %1311 = vmatpush.msra.mxu0 0.0
      %1312 = vmatpush.msra.mxu0 0.0
      %1313 = vmatpush.msra.mxu0 0.0
      %1314 = vmatpush.msra.mxu0 0.0
      %1315 = vmatpush.msra.mxu0 0.0
      %1316 = vmatpush.msra.mxu0 0.0
      %1317 = vmatpush.msra.mxu0 0.0
      %1318 = vmatpush.msra.mxu0 0.0
      %1319 = vmatpush.msra.mxu0 0.0
      %1320 = vmatpush.msra.mxu0 0.0
      %1321 = vmatpush.msra.mxu0 %v1244
      %1322 = vmatpush.msra.mxu0 %v1243
      %1323 = vmatpush.msra.mxu0 %v1242
      %1324 = vmatpush.msra.mxu0 %v1241
      %1325 = vmatmul.f32.gmra.mxu0 %v1286
      %v1326 = vpop.f32.mrf.mxu0
      %v1327 = vadd.f32 %v1248, %v1326
      %1328 = vmatmul.f32.gmra.mxu0 %v1289
      %v1329 = vpop.f32.mrf.mxu0
      %v1330 = vadd.f32 %v1253, %v1329
      %1331 = vmatmul.f32.gmra.mxu0 %v1292
      %v1332 = vpop.f32.mrf.mxu0
      %v1333 = vadd.f32 %v1258, %v1332
      %1334 = vmatmul.f32.gmra.mxu0 %v1295
      %v1335 = vpop.f32.mrf.mxu0
      %v1336 = vadd.f32 %v1263, %v1335
      %1337 = vmatmul.f32.gmra.mxu0 %v1298
      %v1338 = vpop.f32.mrf.mxu0
      %v1339 = vadd.f32 %v1268, %v1338
      %1340 = vmatmul.f32.gmra.mxu0 %v1301
      %v1341 = vpop.f32.mrf.mxu0
      %v1342 = vadd.f32 %v1273, %v1341
      %1343 = vmatmul.f32.gmra.mxu0 %v1304
      %v1344 = vpop.f32.mrf.mxu0
      %v1345 = vadd.f32 %v1278, %v1344
      %1346 = vmatmul.f32.gmra.mxu0 %v1307
      %v1347 = vpop.f32.mrf.mxu0
      %v1348 = vadd.f32 %v1283, %v1347
      %1349 = vdwg.mxu0
      %v1350 = vmax.f32 %v1327, 0.0
      %v1351 = vmax.f32 %v1330, 0.0
      %v1352 = vmax.f32 %v1333, 0.0
      %v1353 = vmax.f32 %v1336, 0.0
      %v1354 = vmax.f32 %v1339, 0.0
      %v1355 = vmax.f32 %v1342, 0.0
      %v1356 = vmax.f32 %v1345, 0.0
      %v1357 = vmax.f32 %v1348, 0.0
      %1366 = vrot.lane.b32.xlu0 %v1350, 112
      %v1367 = vpop.permute.xlu0 %1366
      %1368 = vrot.lane.b32.xlu0 %v1351, 112
      %v1369 = vpop.permute.xlu0 %1368
      %1370 = vrot.lane.b32.xlu0 %v1352, 112
      %v1371 = vpop.permute.xlu0 %1370
      %1372 = vrot.lane.b32.xlu0 %v1353, 112
      %v1373 = vpop.permute.xlu0 %1372
      %1374 = vrot.lane.b32.xlu0 %v1354, 112
      %v1375 = vpop.permute.xlu0 %1374
      %1376 = vrot.lane.b32.xlu0 %v1355, 112
      %v1377 = vpop.permute.xlu0 %1376
      %1378 = vrot.lane.b32.xlu0 %v1356, 112
      %v1379 = vpop.permute.xlu0 %1378
      %1380 = vrot.lane.b32.xlu0 %v1357, 112
      %v1381 = vpop.permute.xlu0 %1380
      %v1390 = vmax.f32 %v1350, %v1367
      %v1391 = vmax.f32 %v1351, %v1369
      %v1392 = vmax.f32 %v1352, %v1371
      %v1393 = vmax.f32 %v1353, %v1373
      %v1394 = vmax.f32 %v1354, %v1375
      %v1395 = vmax.f32 %v1355, %v1377
      %v1396 = vmax.f32 %v1356, %v1379
      %v1397 = vmax.f32 %v1357, %v1381
      %1398 = vrot.lane.b32.xlu0 %v1350, 96
      %v1399 = vpop.permute.xlu0 %1398
      %1400 = vrot.lane.b32.xlu0 %v1351, 96
      %v1401 = vpop.permute.xlu0 %1400
      %1402 = vrot.lane.b32.xlu0 %v1352, 96
      %v1403 = vpop.permute.xlu0 %1402
      %1404 = vrot.lane.b32.xlu0 %v1353, 96
      %v1405 = vpop.permute.xlu0 %1404
      %1406 = vrot.lane.b32.xlu0 %v1354, 96
      %v1407 = vpop.permute.xlu0 %1406
      %1408 = vrot.lane.b32.xlu0 %v1355, 96
      %v1409 = vpop.permute.xlu0 %1408
      %1410 = vrot.lane.b32.xlu0 %v1356, 96
      %v1411 = vpop.permute.xlu0 %1410
      %1412 = vrot.lane.b32.xlu0 %v1357, 96
      %v1413 = vpop.permute.xlu0 %1412
      %v1422 = vmax.f32 %v1390, %v1399
      %v1423 = vmax.f32 %v1391, %v1401
      %v1424 = vmax.f32 %v1392, %v1403
      %v1425 = vmax.f32 %v1393, %v1405
      %v1426 = vmax.f32 %v1394, %v1407
      %v1427 = vmax.f32 %v1395, %v1409
      %v1428 = vmax.f32 %v1396, %v1411
      %v1429 = vmax.f32 %v1397, %v1413
      %1430 = vrot.lane.b32.xlu0 %v1350, 80
      %v1431 = vpop.permute.xlu0 %1430
      %1432 = vrot.lane.b32.xlu0 %v1351, 80
      %v1433 = vpop.permute.xlu0 %1432
      %1434 = vrot.lane.b32.xlu0 %v1352, 80
      %v1435 = vpop.permute.xlu0 %1434
      %1436 = vrot.lane.b32.xlu0 %v1353, 80
      %v1437 = vpop.permute.xlu0 %1436
      %1438 = vrot.lane.b32.xlu0 %v1354, 80
      %v1439 = vpop.permute.xlu0 %1438
      %1440 = vrot.lane.b32.xlu0 %v1355, 80
      %v1441 = vpop.permute.xlu0 %1440
      %1442 = vrot.lane.b32.xlu0 %v1356, 80
      %v1443 = vpop.permute.xlu0 %1442
      %1444 = vrot.lane.b32.xlu0 %v1357, 80
      %v1445 = vpop.permute.xlu0 %1444
      %v1454 = vmax.f32 %v1422, %v1431
      %v1455 = vmax.f32 %v1423, %v1433
      %v1456 = vmax.f32 %v1424, %v1435
      %v1457 = vmax.f32 %v1425, %v1437
      %v1458 = vmax.f32 %v1426, %v1439
      %v1459 = vmax.f32 %v1427, %v1441
      %v1460 = vmax.f32 %v1428, %v1443
      %v1461 = vmax.f32 %v1429, %v1445
      %1462 = vrot.lane.b32.xlu0 %v1350, 64
      %v1463 = vpop.permute.xlu0 %1462
      %1464 = vrot.lane.b32.xlu0 %v1351, 64
      %v1465 = vpop.permute.xlu0 %1464
      %1466 = vrot.lane.b32.xlu0 %v1352, 64
      %v1467 = vpop.permute.xlu0 %1466
      %1468 = vrot.lane.b32.xlu0 %v1353, 64
      %v1469 = vpop.permute.xlu0 %1468
      %1470 = vrot.lane.b32.xlu0 %v1354, 64
      %v1471 = vpop.permute.xlu0 %1470
      %1472 = vrot.lane.b32.xlu0 %v1355, 64
      %v1473 = vpop.permute.xlu0 %1472
      %1474 = vrot.lane.b32.xlu0 %v1356, 64
      %v1475 = vpop.permute.xlu0 %1474
      %1476 = vrot.lane.b32.xlu0 %v1357, 64
      %v1477 = vpop.permute.xlu0 %1476
      %v1486 = vmax.f32 %v1454, %v1463
      %v1487 = vmax.f32 %v1455, %v1465
      %v1488 = vmax.f32 %v1456, %v1467
      %v1489 = vmax.f32 %v1457, %v1469
      %v1490 = vmax.f32 %v1458, %v1471
      %v1491 = vmax.f32 %v1459, %v1473
      %v1492 = vmax.f32 %v1460, %v1475
      %v1493 = vmax.f32 %v1461, %v1477
      %1494 = vrot.lane.b32.xlu0 %v1350, 48
      %v1495 = vpop.permute.xlu0 %1494
      %1496 = vrot.lane.b32.xlu0 %v1351, 48
      %v1497 = vpop.permute.xlu0 %1496
      %1498 = vrot.lane.b32.xlu0 %v1352, 48
      %v1499 = vpop.permute.xlu0 %1498
      %1500 = vrot.lane.b32.xlu0 %v1353, 48
      %v1501 = vpop.permute.xlu0 %1500
      %1502 = vrot.lane.b32.xlu0 %v1354, 48
      %v1503 = vpop.permute.xlu0 %1502
      %1504 = vrot.lane.b32.xlu0 %v1355, 48
      %v1505 = vpop.permute.xlu0 %1504
      %1506 = vrot.lane.b32.xlu0 %v1356, 48
      %v1507 = vpop.permute.xlu0 %1506
      %1508 = vrot.lane.b32.xlu0 %v1357, 48
      %v1509 = vpop.permute.xlu0 %1508
      %v1518 = vmax.f32 %v1486, %v1495
      %v1519 = vmax.f32 %v1487, %v1497
      %v1520 = vmax.f32 %v1488, %v1499
      %v1521 = vmax.f32 %v1489, %v1501
      %v1522 = vmax.f32 %v1490, %v1503
      %v1523 = vmax.f32 %v1491, %v1505
      %v1524 = vmax.f32 %v1492, %v1507
      %v1525 = vmax.f32 %v1493, %v1509
      %1526 = vrot.lane.b32.xlu0 %v1350, 32
      %v1527 = vpop.permute.xlu0 %1526
      %1528 = vrot.lane.b32.xlu0 %v1351, 32
      %v1529 = vpop.permute.xlu0 %1528
      %1530 = vrot.lane.b32.xlu0 %v1352, 32
      %v1531 = vpop.permute.xlu0 %1530
      %1532 = vrot.lane.b32.xlu0 %v1353, 32
      %v1533 = vpop.permute.xlu0 %1532
      %1534 = vrot.lane.b32.xlu0 %v1354, 32
      %v1535 = vpop.permute.xlu0 %1534
      %1536 = vrot.lane.b32.xlu0 %v1355, 32
      %v1537 = vpop.permute.xlu0 %1536
      %1538 = vrot.lane.b32.xlu0 %v1356, 32
      %v1539 = vpop.permute.xlu0 %1538
      %1540 = vrot.lane.b32.xlu0 %v1357, 32
      %v1541 = vpop.permute.xlu0 %1540
      %v1550 = vmax.f32 %v1518, %v1527
      %v1551 = vmax.f32 %v1519, %v1529
      %v1552 = vmax.f32 %v1520, %v1531
      %v1553 = vmax.f32 %v1521, %v1533
      %v1554 = vmax.f32 %v1522, %v1535
      %v1555 = vmax.f32 %v1523, %v1537
      %v1556 = vmax.f32 %v1524, %v1539
      %v1557 = vmax.f32 %v1525, %v1541
      %1558 = vrot.lane.b32.xlu0 %v1350, 16
      %v1559 = vpop.permute.xlu0 %1558
      %1560 = vrot.lane.b32.xlu0 %v1351, 16
      %v1561 = vpop.permute.xlu0 %1560
      %1562 = vrot.lane.b32.xlu0 %v1352, 16
      %v1563 = vpop.permute.xlu0 %1562
      %1564 = vrot.lane.b32.xlu0 %v1353, 16
      %v1565 = vpop.permute.xlu0 %1564
      %1566 = vrot.lane.b32.xlu0 %v1354, 16
      %v1567 = vpop.permute.xlu0 %1566
      %1568 = vrot.lane.b32.xlu0 %v1355, 16
      %v1569 = vpop.permute.xlu0 %1568
      %1570 = vrot.lane.b32.xlu0 %v1356, 16
      %v1571 = vpop.permute.xlu0 %1570
      %1572 = vrot.lane.b32.xlu0 %v1357, 16
      %v1573 = vpop.permute.xlu0 %1572
      %v1582 = vmax.f32 %v1550, %v1559
      %v1583 = vmax.f32 %v1551, %v1561
      %v1584 = vmax.f32 %v1552, %v1563
      %v1585 = vmax.f32 %v1553, %v1565
      %v1586 = vmax.f32 %v1554, %v1567
      %v1587 = vmax.f32 %v1555, %v1569
      %v1588 = vmax.f32 %v1556, %v1571
      %v1589 = vmax.f32 %v1557, %v1573
      %1590 = vst.msk [vmem:[%s353] sm:$0xff] %vm437, %v1582
      %1591 = vst.msk [vmem:[%s353 + $0x8] sm:$0xff] %vm437, %v1583
      %1592 = vst.msk [vmem:[%s353 + $0x10] sm:$0xff] %vm437, %v1584
      %1593 = vst.msk [vmem:[%s353 + $0x18] sm:$0xff] %vm437, %v1585
      %1594 = vst.msk [vmem:[%s353 + $0x20] sm:$0xff] %vm437, %v1586
      %1595 = vst.msk [vmem:[%s353 + $0x28] sm:$0xff] %vm437, %v1587
      %1596 = vst.msk [vmem:[%s353 + $0x30] sm:$0xff] %vm437, %v1588
      %1597 = vst.msk [vmem:[%s353 + $0x38] sm:$0xff] %vm437, %v1589
      %p1598 = scmp.lt.s32.totalorder %s23, 1
      %s1599 = scalar_select %p1598, %s23, 1
      %p1600 = scmp.lt.s32.totalorder %s24, 0
      %s1601 = scalar_select %p1600, %s24, 0
      %s1602 = smul.addr %s1599, 8
      %s1603 = sadd.s32 %s1601, %s1602
      %s1604 = smul.addr %s1603, 8
      %s1605 = scalar_lea.vmem %s8, %s1604
      // Predicated region
      $region53: #{sapp_forward.1} parent=51 // pred_check
        %p1606 = pneg %p231
      $region54: #{sapp_forward.1} parent=51 // pred_check_branch
        %1608 = sbr.rel (%p1606) target = $region56
      $region55: #{sapp_forward.1} parent=51 // pred_region
        _
      $region56: #{sapp_forward.1} parent=51 // pred_fallthru
        _
    $region52: #{sapp_forward.1} parent=5 // pred_fallthru
      _
    %p1609 = scmp.le.s32.totalorder 2, %s14
    // Predicated region
    $region57: #{sapp_forward.1} parent=5 // pred_check
      %p1610 = pneg %p1609
    $region58: #{sapp_forward.1} parent=5 // pred_check_branch
      %1612 = sbr.rel (%p1610) target = $region60
    $region59: #{sapp_forward.1} parent=5 // pred_region
      %s1613 = ssub.s32 %s14, 2
      // Predicated region
      $region61: #{sapp_forward.1} parent=59 // pred_check
        %p1614 = pneg %p237
      $region62: #{sapp_forward.1} parent=59 // pred_check_branch
        %1616 = sbr.rel (%p1614) target = $region64
      $region63: #{sapp_forward.1} parent=59 // pred_region
        %p1617 = scmp.lt.s32.totalorder %s25, 1
        %s1618 = scalar_select %p1617, %s25, 1
        %p1619 = scmp.lt.s32.totalorder %s26, 0
        %s1620 = scalar_select %p1619, %s26, 0
        %s1621 = smul.addr %s1618, 8
        %s1622 = sadd.s32 %s1620, %s1621
        %s1623 = smul.addr %s1622, 8
        %s1624 = scalar_lea.vmem %s8, %s1623
      $region64: #{sapp_forward.1} parent=59 // pred_fallthru
        _
    $region60: #{sapp_forward.1} parent=5 // pred_fallthru
      _
  $region6: #{sapp_forward.1} parent=0 // loop_footer
    %s18 = sadd.s32 1, %s14
  $region7: #{sapp_forward.1} parent=0 // loop_footer_branch
    %13 = sbr.rel target = $region3
  $region8: #{sapp_forward.1} parent=0 // loop_exit
    _

</llo_original>
